<compile_context>
chip_gen: v6e
topology: v6e:2x2x1
jax: 0.10.0
libtpu: 0.0.40
codegen_flags: <defaults>
</compile_context>

<pallas_src>
import jax
import jax.numpy as jnp
from jax.experimental import pallas as pl
from jax.experimental.pallas import tpu as pltpu


def _rup(x, m):
    return (x + m - 1) // m * m


LEAK = 0.2                  # LeakyReLU negative slope
MXU_DTYPE = jnp.bfloat16    # bf16 MXU operands, f32 accumulation


def _leaky_relu(y):
    # slope < 1, so max(y, slope*y) is exact LeakyReLU.
    return jnp.maximum(y, LEAK * y)


# --------------------------- Pallas kernel bodies ---------------------------

def _make_stage1_kernel(m_total, tm):
    """Per M-tile: conv1(+bias) -> lrelu -> conv2 -> h2 tile; accumulate the
    per-channel sum / sum-of-squares of h2 across the M grid axis."""

    def kernel(x_ref, w1_ref, b1_ref, w2_ref, h2_ref, sum_ref, sq_ref):
        @pl.when(pl.program_id(0) == 0)
        def _():
            sum_ref[...] = jnp.zeros_like(sum_ref)
            sq_ref[...] = jnp.zeros_like(sq_ref)

        h1 = jnp.dot(x_ref[...], w1_ref[...],
                     preferred_element_type=jnp.float32) + b1_ref[...]
        h1 = _leaky_relu(h1)
        h2 = jnp.dot(h1.astype(w2_ref.dtype), w2_ref[...],
                     preferred_element_type=jnp.float32)
        h2_ref[...] = h2

        # Rows past the true M are zero-padded inputs, but conv1's bias makes
        # them non-zero; mask them out of the BatchNorm batch statistics.
        row = (jax.lax.broadcasted_iota(jnp.int32, h2.shape, 0)
               + pl.program_id(0) * tm)
        valid = (row < m_total).astype(jnp.float32)
        h2v = h2 * valid
        sum_ref[...] += jnp.sum(h2v, axis=0, keepdims=True)
        sq_ref[...] += jnp.sum(h2v * h2v, axis=0, keepdims=True)

    return kernel


def _stage2_kernel(h2_ref, scale_ref, shift_ref, w3_ref, o_ref):
    """BatchNorm affine + LeakyReLU fused into the final 1x1-conv matmul."""
    y = h2_ref[...] * scale_ref[...] + shift_ref[...]
    y = _leaky_relu(y)
    o_ref[...] = jnp.dot(y.astype(w3_ref.dtype), w3_ref[...],
                         preferred_element_type=jnp.float32)


# --------------------------------- forward ----------------------------------

def pixel_discriminator_forward(params, x_nchw, eps=1e-5, tm=256):
    N, Cin, H, W = x_nchw.shape
    M = N * H * W
    x2d = jnp.transpose(x_nchw, (0, 2, 3, 1)).reshape(M, Cin)

    w1, b1 = params["w1"], params["b1"]            # (Cin, ndf), (ndf,)
    w2 = params["w2"]                              # (ndf, 2*ndf), no bias
    gamma, beta = params["bn_gamma"], params["bn_beta"]
    w3 = params["w3"]                              # (2*ndf, 1), no bias

    C1, C2, Cout = w1.shape[1], w2.shape[1], w3.shape[1]
    Cin_p, C1_p = _rup(Cin, 128), _rup(C1, 128)
    C2_p, Cout_p = _rup(C2, 128), _rup(Cout, 128)

    tm = min(tm, _rup(M, 8))
    Mp = _rup(M, tm)
    n_m = Mp // tm

    xp = jnp.pad(x2d.astype(jnp.float32),
                 ((0, Mp - M), (0, Cin_p - Cin))).astype(MXU_DTYPE)
    w1p = jnp.pad(w1, ((0, Cin_p - Cin), (0, C1_p - C1))).astype(MXU_DTYPE)
    b1p = jnp.pad(b1, (0, C1_p - C1)).reshape(1, C1_p).astype(jnp.float32)
    w2p = jnp.pad(w2, ((0, C1_p - C1), (0, C2_p - C2))).astype(MXU_DTYPE)

    # ---- pass 1: conv1 + lrelu + conv2, fused with BN batch-stat reduction ----
    h2_p, s, sq = pl.pallas_call(
        _make_stage1_kernel(M, tm),
        out_shape=(jax.ShapeDtypeStruct((Mp, C2_p), jnp.float32),
                   jax.ShapeDtypeStruct((1, C2_p), jnp.float32),
                   jax.ShapeDtypeStruct((1, C2_p), jnp.float32)),
        grid_spec=pltpu.PrefetchScalarGridSpec(
            num_scalar_prefetch=0,
            grid=(n_m,),
            in_specs=[pl.BlockSpec((tm, Cin_p), lambda i: (i, 0)),
                      pl.BlockSpec((Cin_p, C1_p), lambda i: (0, 0)),
                      pl.BlockSpec((1, C1_p), lambda i: (0, 0)),
                      pl.BlockSpec((C1_p, C2_p), lambda i: (0, 0))],
            out_specs=[pl.BlockSpec((tm, C2_p), lambda i: (i, 0)),
                       pl.BlockSpec((1, C2_p), lambda i: (0, 0)),
                       pl.BlockSpec((1, C2_p), lambda i: (0, 0))]),
        compiler_params=pltpu.CompilerParams(
            dimension_semantics=("arbitrary",)),
    )(xp, w1p, b1p, w2p)

    # ---- BatchNorm (training mode) scale/shift from accumulated stats ----
    # Tiny 1 x C math: keep in plain jnp (perf feedback: don't route tiny ops
    # through padded MXU-sized pallas_calls). Stats stay in f32.
    mean = s[0, :C2] / M
    var = jnp.maximum(sq[0, :C2] / M - mean * mean, 0.0)   # biased var (BN train)
    scale = gamma / jnp.sqrt(var + eps)
    shift = beta - mean * scale
    scale_p = jnp.pad(scale, (0, C2_p - C2)).reshape(1, C2_p).astype(jnp.float32)
    shift_p = jnp.pad(shift, (0, C2_p - C2)).reshape(1, C2_p).astype(jnp.float32)
    w3p = jnp.pad(w3, ((0, C2_p - C2), (0, Cout_p - Cout))).astype(MXU_DTYPE)

    # ---- pass 2: BN affine + lrelu fused into conv3 matmul ----
    out_p = pl.pallas_call(
        _stage2_kernel,
        out_shape=jax.ShapeDtypeStruct((Mp, Cout_p), jnp.float32),
        grid_spec=pltpu.PrefetchScalarGridSpec(
            num_scalar_prefetch=0,
            grid=(n_m,),
            in_specs=[pl.BlockSpec((tm, C2_p), lambda i: (i, 0)),
                      pl.BlockSpec((1, C2_p), lambda i: (0, 0)),
                      pl.BlockSpec((1, C2_p), lambda i: (0, 0)),
                      pl.BlockSpec((C2_p, Cout_p), lambda i: (0, 0))],
            out_specs=pl.BlockSpec((tm, Cout_p), lambda i: (i, 0))),
        compiler_params=pltpu.CompilerParams(
            dimension_semantics=("parallel",)),
    )(h2_p, scale_p, shift_p, w3p)

    out2d = out_p[:M, :Cout]
    return jnp.transpose(out2d.reshape(N, H, W, Cout), (0, 3, 1, 2))


# ------------------------------- parameters ---------------------------------

def init_params(key, input_nc, ndf=64):
    k1, k2, k3, k4 = jax.random.split(key, 4)

    def rnd(k, shape, scale=0.05):
        return scale * jax.random.normal(k, shape, jnp.float32)

    # Torch Conv2d(Cin, Cout, 1).weight is (Cout, Cin, 1, 1); we store the
    # equivalent matmul layout (Cin, Cout) directly.
    return {
        "w1": rnd(k1, (input_nc, ndf)),
        "b1": rnd(k2, (ndf,)),
        "w2": rnd(k3, (ndf, 2 * ndf)),          # bias=False (BatchNorm layer)
        "bn_gamma": jnp.ones((2 * ndf,), jnp.float32),
        "bn_beta": jnp.zeros((2 * ndf,), jnp.float32),
        "w3": rnd(k4, (2 * ndf, 1)),            # bias=False
    }


def reference_forward(params, x_nchw, eps=1e-5):
    """Pure-jnp f32 reference with PyTorch semantics (BN training mode)."""
    N, Cin, H, W = x_nchw.shape
    x = jnp.transpose(x_nchw, (0, 2, 3, 1)).reshape(-1, Cin).astype(jnp.float32)
    h = x @ params["w1"] + params["b1"]
    h = jnp.where(h > 0, h, LEAK * h)
    h = h @ params["w2"]
    mean = h.mean(axis=0)
    var = jnp.maximum(((h - mean) ** 2).mean(axis=0), 0.0)
    h = (h - mean) / jnp.sqrt(var + eps) * params["bn_gamma"] + params["bn_beta"]
    h = jnp.where(h > 0, h, LEAK * h)
    out = h @ params["w3"]
    return jnp.transpose(out.reshape(N, H, W, 1), (0, 3, 1, 2))


if __name__ == "__main__":
    input_nc, ndf = 4, 64
    N, H, W = 2, 16, 16

    key = jax.random.PRNGKey(0)
    kp, kx = jax.random.split(key)
    params = init_params(kp, input_nc, ndf)
    x = jax.random.normal(kx, (N, input_nc, H, W), jnp.float32)

    fwd = jax.jit(pixel_discriminator_forward)
    out = fwd(params, x)
    jax.block_until_ready(out)

    assert out.shape == (N, 1, H, W), out.shape

    # Sanity check against a pure-jnp f32 reference (loose tol: bf16 MXU operands).
    ref = reference_forward(params, x)
    err = float(jnp.max(jnp.abs(out - ref)))
    assert err < 1e-1, f"max abs err vs reference: {err}"

    print("KERNEL_OK")
</pallas_src>

<mosaic_0001>
module attributes {stable_mosaic.version = 11 : i64} {
  func.func @kernel(%arg0: i32, %arg1: memref<256x128xbf16, #tpu.memory_space<vmem>>, %arg2: memref<128x128xbf16, #tpu.memory_space<vmem>>, %arg3: memref<1x128xf32, #tpu.memory_space<vmem>>, %arg4: memref<128x128xbf16, #tpu.memory_space<vmem>>, %arg5: memref<256x128xf32, #tpu.memory_space<vmem>>, %arg6: memref<1x128xf32, #tpu.memory_space<vmem>>, %arg7: memref<1x128xf32, #tpu.memory_space<vmem>>) attributes {dimension_semantics = [#tpu.dimension_semantics<arbitrary>], iteration_bounds = array<i64: 2>, scalar_prefetch = 0 : i64, scratch_operands = 0 : i64, tpu.core_type = #tpu.core_type<tc>, window_params = [{transform_indices = @transform_0, window_bounds = array<i64: 256, 128>}, {pipeline_mode = #tpu.pipeline_mode<synchronous>, transform_indices = @transform_1, window_bounds = array<i64: 128, 128>}, {pipeline_mode = #tpu.pipeline_mode<synchronous>, transform_indices = @transform_2, window_bounds = array<i64: 1, 128>}, {pipeline_mode = #tpu.pipeline_mode<synchronous>, transform_indices = @transform_3, window_bounds = array<i64: 128, 128>}, {transform_indices = @transform_4, window_bounds = array<i64: 256, 128>}, {pipeline_mode = #tpu.pipeline_mode<synchronous>, transform_indices = @transform_5, window_bounds = array<i64: 1, 128>}, {pipeline_mode = #tpu.pipeline_mode<synchronous>, transform_indices = @transform_6, window_bounds = array<i64: 1, 128>}]} {
    %c0_i32 = arith.constant 0 : i32
    %0 = arith.cmpi eq, %arg0, %c0_i32 : i32
    %1 = arith.extui %0 : i1 to i32
    %c0_i32_0 = arith.constant 0 : i32
    %2 = arith.cmpi ne, %1, %c0_i32_0 : i32
    scf.if %2 {
      %cst_22 = arith.constant 0.000000e+00 : f32
      %36 = vector.broadcast %cst_22 : f32 to vector<1x128xf32>
      %c0_23 = arith.constant 0 : index
      %c0_24 = arith.constant 0 : index
      %37 = vector.load %arg6[%c0_23, %c0_24] : memref<1x128xf32, #tpu.memory_space<vmem>>, vector<1x128xf32>
      tpu.vector_store %arg6[%c0_23, %c0_24], %36 {strides = array<i32>} : memref<1x128xf32, #tpu.memory_space<vmem>>, vector<1x128xf32>,
      %cst_25 = arith.constant 0.000000e+00 : f32
      %38 = vector.broadcast %cst_25 : f32 to vector<1x128xf32>
      %c0_26 = arith.constant 0 : index
      %c0_27 = arith.constant 0 : index
      %39 = vector.load %arg7[%c0_26, %c0_27] : memref<1x128xf32, #tpu.memory_space<vmem>>, vector<1x128xf32>
      tpu.vector_store %arg7[%c0_26, %c0_27], %38 {strides = array<i32>} : memref<1x128xf32, #tpu.memory_space<vmem>>, vector<1x128xf32>,
    } else {
    }
    %c0 = arith.constant 0 : index
    %c0_1 = arith.constant 0 : index
    %3 = vector.load %arg1[%c0, %c0_1] : memref<256x128xbf16, #tpu.memory_space<vmem>>, vector<256x128xbf16>
    %c0_2 = arith.constant 0 : index
    %c0_3 = arith.constant 0 : index
    %4 = vector.load %arg2[%c0_2, %c0_3] : memref<128x128xbf16, #tpu.memory_space<vmem>>, vector<128x128xbf16>
    %cst = arith.constant dense<0.000000e+00> : vector<256x128xf32>
    %5 = tpu.matmul %3, %4, %cst {dimension_numbers = #tpu.dot_dimension_numbers<[1], [0], [0], [1], [0, 0, 1, 1], [], []>} : vector<256x128xbf16>, vector<128x128xbf16>, vector<256x128xf32> -> vector<256x128xf32>
    %c0_4 = arith.constant 0 : index
    %c0_5 = arith.constant 0 : index
    %6 = vector.load %arg3[%c0_4, %c0_5] : memref<1x128xf32, #tpu.memory_space<vmem>>, vector<1x128xf32>
    %7 = vector.broadcast %6 : vector<1x128xf32> to vector<256x128xf32>
    %8 = arith.addf %5, %7 : vector<256x128xf32>
    %cst_6 = arith.constant 2.000000e-01 : f32
    %9 = vector.broadcast %cst_6 : f32 to vector<256x128xf32>
    %10 = arith.mulf %9, %8 : vector<256x128xf32>
    %11 = arith.maximumf %8, %10 : vector<256x128xf32>
    %12 = arith.truncf %11 : vector<256x128xf32> to vector<256x128xbf16>
    %c0_7 = arith.constant 0 : index
    %c0_8 = arith.constant 0 : index
    %13 = vector.load %arg4[%c0_7, %c0_8] : memref<128x128xbf16, #tpu.memory_space<vmem>>, vector<128x128xbf16>
    %cst_9 = arith.constant dense<0.000000e+00> : vector<256x128xf32>
    %14 = tpu.matmul %12, %13, %cst_9 {dimension_numbers = #tpu.dot_dimension_numbers<[1], [0], [0], [1], [0, 0, 1, 1], [], []>} : vector<256x128xbf16>, vector<128x128xbf16>, vector<256x128xf32> -> vector<256x128xf32>
    %c0_10 = arith.constant 0 : index
    %c0_11 = arith.constant 0 : index
    %15 = vector.load %arg5[%c0_10, %c0_11] : memref<256x128xf32, #tpu.memory_space<vmem>>, vector<256x128xf32>
    tpu.vector_store %arg5[%c0_10, %c0_11], %14 {strides = array<i32>} : memref<256x128xf32, #tpu.memory_space<vmem>>, vector<256x128xf32>,
    %16 = tpu.iota {dimensions = array<i32: 0>} : vector<256x128xi32>
    %c256_i32 = arith.constant 256 : i32
    %17 = arith.muli %arg0, %c256_i32 : i32
    %18 = vector.broadcast %17 : i32 to vector<256x128xi32>
    %19 = arith.addi %16, %18 : vector<256x128xi32>
    %c512_i32 = arith.constant 512 : i32
    %20 = vector.broadcast %c512_i32 : i32 to vector<256x128xi32>
    %21 = arith.cmpi slt, %19, %20 : vector<256x128xi32>
    %22 = arith.extui %21 : vector<256x128xi1> to vector<256x128xi32>
    %23 = arith.sitofp %22 : vector<256x128xi32> to vector<256x128xf32>
    %24 = arith.mulf %14, %23 : vector<256x128xf32>
    %c0_12 = arith.constant 0 : index
    %c0_13 = arith.constant 0 : index
    %25 = vector.load %arg6[%c0_12, %c0_13] : memref<1x128xf32, #tpu.memory_space<vmem>>, vector<1x128xf32>
    %cst_14 = arith.constant dense<0.000000e+00> : vector<128xf32>
    %26 = vector.multi_reduction <add>, %24, %cst_14 [0] : vector<256x128xf32> to vector<128xf32>
    %27 = vector.shape_cast %26 : vector<128xf32> to vector<1x128xf32>
    %28 = arith.addf %25, %27 : vector<1x128xf32>
    %c0_15 = arith.constant 0 : index
    %c0_16 = arith.constant 0 : index
    %29 = vector.load %arg6[%c0_15, %c0_16] : memref<1x128xf32, #tpu.memory_space<vmem>>, vector<1x128xf32>
    tpu.vector_store %arg6[%c0_15, %c0_16], %28 {strides = array<i32>} : memref<1x128xf32, #tpu.memory_space<vmem>>, vector<1x128xf32>,
    %c0_17 = arith.constant 0 : index
    %c0_18 = arith.constant 0 : index
    %30 = vector.load %arg7[%c0_17, %c0_18] : memref<1x128xf32, #tpu.memory_space<vmem>>, vector<1x128xf32>
    %31 = arith.mulf %24, %24 : vector<256x128xf32>
    %cst_19 = arith.constant dense<0.000000e+00> : vector<128xf32>
    %32 = vector.multi_reduction <add>, %31, %cst_19 [0] : vector<256x128xf32> to vector<128xf32>
    %33 = vector.shape_cast %32 : vector<128xf32> to vector<1x128xf32>
    %34 = arith.addf %30, %33 : vector<1x128xf32>
    %c0_20 = arith.constant 0 : index
    %c0_21 = arith.constant 0 : index
    %35 = vector.load %arg7[%c0_20, %c0_21] : memref<1x128xf32, #tpu.memory_space<vmem>>, vector<1x128xf32>
    tpu.vector_store %arg7[%c0_20, %c0_21], %34 {strides = array<i32>} : memref<1x128xf32, #tpu.memory_space<vmem>>, vector<1x128xf32>,
    return
  }
  func.func @transform_0(%arg0: i32) -> (i32, i32) {
    %c0_i32 = arith.constant 0 : i32
    %c0_i32_0 = arith.constant 0 : i32
    return %arg0, %c0_i32 : i32, i32
  }
  func.func @transform_1(%arg0: i32) -> (i32, i32) {
    %c0_i32 = arith.constant 0 : i32
    %c0_i32_0 = arith.constant 0 : i32
    %c0_i32_1 = arith.constant 0 : i32
    return %c0_i32, %c0_i32_0 : i32, i32
  }
  func.func @transform_2(%arg0: i32) -> (i32, i32) {
    %c0_i32 = arith.constant 0 : i32
    %c0_i32_0 = arith.constant 0 : i32
    %c0_i32_1 = arith.constant 0 : i32
    return %c0_i32, %c0_i32_0 : i32, i32
  }
  func.func @transform_3(%arg0: i32) -> (i32, i32) {
    %c0_i32 = arith.constant 0 : i32
    %c0_i32_0 = arith.constant 0 : i32
    %c0_i32_1 = arith.constant 0 : i32
    return %c0_i32, %c0_i32_0 : i32, i32
  }
  func.func @transform_4(%arg0: i32) -> (i32, i32) {
    %c0_i32 = arith.constant 0 : i32
    %c0_i32_0 = arith.constant 0 : i32
    return %arg0, %c0_i32 : i32, i32
  }
  func.func @transform_5(%arg0: i32) -> (i32, i32) {
    %c0_i32 = arith.constant 0 : i32
    %c0_i32_0 = arith.constant 0 : i32
    %c0_i32_1 = arith.constant 0 : i32
    return %c0_i32, %c0_i32_0 : i32, i32
  }
  func.func @transform_6(%arg0: i32) -> (i32, i32) {
    %c0_i32 = arith.constant 0 : i32
    %c0_i32_0 = arith.constant 0 : i32
    %c0_i32_1 = arith.constant 0 : i32
    return %c0_i32, %c0_i32_0 : i32, i32
  }
}

module attributes {stable_mosaic.version = 11 : i64} {
  func.func @_stage2_kernel(%arg0: i32, %arg1: memref<256x128xf32, #tpu.memory_space<vmem>>, %arg2: memref<1x128xf32, #tpu.memory_space<vmem>>, %arg3: memref<1x128xf32, #tpu.memory_space<vmem>>, %arg4: memref<128x128xbf16, #tpu.memory_space<vmem>>, %arg5: memref<256x128xf32, #tpu.memory_space<vmem>>) attributes {dimension_semantics = [#tpu.dimension_semantics<parallel>], iteration_bounds = array<i64: 2>, scalar_prefetch = 0 : i64, scratch_operands = 0 : i64, tpu.core_type = #tpu.core_type<tc>, window_params = [{transform_indices = @transform_0, window_bounds = array<i64: 256, 128>}, {pipeline_mode = #tpu.pipeline_mode<synchronous>, transform_indices = @transform_1, window_bounds = array<i64: 1, 128>}, {pipeline_mode = #tpu.pipeline_mode<synchronous>, transform_indices = @transform_2, window_bounds = array<i64: 1, 128>}, {pipeline_mode = #tpu.pipeline_mode<synchronous>, transform_indices = @transform_3, window_bounds = array<i64: 128, 128>}, {transform_indices = @transform_4, window_bounds = array<i64: 256, 128>}]} {
    %c0 = arith.constant 0 : index
    %c0_0 = arith.constant 0 : index
    %0 = vector.load %arg1[%c0, %c0_0] : memref<256x128xf32, #tpu.memory_space<vmem>>, vector<256x128xf32>
    %c0_1 = arith.constant 0 : index
    %c0_2 = arith.constant 0 : index
    %1 = vector.load %arg2[%c0_1, %c0_2] : memref<1x128xf32, #tpu.memory_space<vmem>>, vector<1x128xf32>
    %2 = vector.broadcast %1 : vector<1x128xf32> to vector<256x128xf32>
    %3 = arith.mulf %0, %2 : vector<256x128xf32>
    %c0_3 = arith.constant 0 : index
    %c0_4 = arith.constant 0 : index
    %4 = vector.load %arg3[%c0_3, %c0_4] : memref<1x128xf32, #tpu.memory_space<vmem>>, vector<1x128xf32>
    %5 = vector.broadcast %4 : vector<1x128xf32> to vector<256x128xf32>
    %6 = arith.addf %3, %5 : vector<256x128xf32>
    %cst = arith.constant 2.000000e-01 : f32
    %7 = vector.broadcast %cst : f32 to vector<256x128xf32>
    %8 = arith.mulf %7, %6 : vector<256x128xf32>
    %9 = arith.maximumf %6, %8 : vector<256x128xf32>
    %10 = arith.truncf %9 : vector<256x128xf32> to vector<256x128xbf16>
    %c0_5 = arith.constant 0 : index
    %c0_6 = arith.constant 0 : index
    %11 = vector.load %arg4[%c0_5, %c0_6] : memref<128x128xbf16, #tpu.memory_space<vmem>>, vector<128x128xbf16>
    %cst_7 = arith.constant dense<0.000000e+00> : vector<256x128xf32>
    %12 = tpu.matmul %10, %11, %cst_7 {dimension_numbers = #tpu.dot_dimension_numbers<[1], [0], [0], [1], [0, 0, 1, 1], [], []>} : vector<256x128xbf16>, vector<128x128xbf16>, vector<256x128xf32> -> vector<256x128xf32>
    %c0_8 = arith.constant 0 : index
    %c0_9 = arith.constant 0 : index
    %13 = vector.load %arg5[%c0_8, %c0_9] : memref<256x128xf32, #tpu.memory_space<vmem>>, vector<256x128xf32>
    tpu.vector_store %arg5[%c0_8, %c0_9], %12 {strides = array<i32>} : memref<256x128xf32, #tpu.memory_space<vmem>>, vector<256x128xf32>,
    return
  }
  func.func @transform_0(%arg0: i32) -> (i32, i32) {
    %c0_i32 = arith.constant 0 : i32
    %c0_i32_0 = arith.constant 0 : i32
    return %arg0, %c0_i32 : i32, i32
  }
  func.func @transform_1(%arg0: i32) -> (i32, i32) {
    %c0_i32 = arith.constant 0 : i32
    %c0_i32_0 = arith.constant 0 : i32
    %c0_i32_1 = arith.constant 0 : i32
    return %c0_i32, %c0_i32_0 : i32, i32
  }
  func.func @transform_2(%arg0: i32) -> (i32, i32) {
    %c0_i32 = arith.constant 0 : i32
    %c0_i32_0 = arith.constant 0 : i32
    %c0_i32_1 = arith.constant 0 : i32
    return %c0_i32, %c0_i32_0 : i32, i32
  }
  func.func @transform_3(%arg0: i32) -> (i32, i32) {
    %c0_i32 = arith.constant 0 : i32
    %c0_i32_0 = arith.constant 0 : i32
    %c0_i32_1 = arith.constant 0 : i32
    return %c0_i32, %c0_i32_0 : i32, i32
  }
  func.func @transform_4(%arg0: i32) -> (i32, i32) {
    %c0_i32 = arith.constant 0 : i32
    %c0_i32_0 = arith.constant 0 : i32
    return %arg0, %c0_i32 : i32, i32
  }
}

</mosaic_0001>

<llo_original>
// kernel: pixel_discriminator_forward.3
$region0: #{pixel_discriminator_forward.3}
  #allocation0 [shape = 'u32[]', space=smem, size = 0x4, offset = 0x4, fixed_abs, tag = 'smem constant byte address 0x4 - core index']
  #allocation1 [shape = 'u32[144,128]{1,0:T(1,128)}', space=vmem, size = 0x12000, scoped, tag = 'internal scratch']
  %s0 = inlined_call_operand.vmem [shape: f32[512,128], index: 0, kind: input, shape index: {}]
  %s1 = inlined_call_operand.vmem [shape: f32[1,128], index: 1, kind: input, shape index: {}]
  %s2 = inlined_call_operand.vmem [shape: f32[1,128], index: 2, kind: input, shape index: {}]
  %s3 = inlined_call_operand.vmem [shape: bf16[128,128], index: 3, kind: input, shape index: {}]
  %s4 = inlined_call_operand.vmem [shape: f32[512,128], index: 4, kind: output, shape index: {}]
  %s5 = sld [smem:[#allocation0]]
  $region49: #{pixel_discriminator_forward.3} parent=0
    _
  %s7 = ssub.s32 1, %s5
  %s8 = scalar_select 0, %s7, %s5
  loop: start=0, step=1, limit=4
  $region2: #{pixel_discriminator_forward.3} parent=0 // loop_pre_header
    _
  $region3: #{pixel_discriminator_forward.3} parent=0 // loop_header
    %s10 = sphi 0, %s14
    %p11 = scmp.ge.s32.totalorder %s10, 4
    %s20 = sphi 0, %s22
    %s23 = sphi 0, %s20
    %s24 = sphi 0, %s23
    %s40 = sphi 0, %s24
    %s44 = sphi 0, %s44
    %s46 = sphi 0, %s44
    %s47 = sphi 0, %s46
    %s61 = sphi 0, %s47
    %s65 = sphi 0, %s65
    %s67 = sphi 0, %s65
    %s68 = sphi 0, %s67
    %s82 = sphi 0, %s68
    %s86 = sphi 0, %s86
    %s88 = sphi 0, %s86
    %s89 = sphi 0, %s88
    %s103 = sphi 0, %s89
    %s109 = sphi 0, %s111
    %s112 = sphi 0, %s109
    %s113 = sphi 0, %s112
    %s129 = sphi 0, %s113
  $region4: #{pixel_discriminator_forward.3} parent=0 // loop_header_branch
    %13 = sbr.rel (%p11) target = $region8
  $region5: #{pixel_discriminator_forward.3} parent=0 // loop_body
    %s15 = ssub.s32 %s10, 1
    %s16 = ssub.s32 %s10, 2
    %s17 = sadd.s32 %s10, 1
    %s18 = ssub.s32 %s10, %s17
    %p19 = scmp.eq.s32.totalorder %s18, 0
    %s21 = sadd.s32 %s20, 1
    %s22 = scalar_select %p19, %s20, %s21
    %p25 = pneg %p19
    %p26 = scmp.eq.s32.totalorder %s10, 1
    %p27 = por %p25, %p26
    %p28 = scmp.ne.s32.totalorder %s20, %s23
    %p29 = scmp.eq.s32.totalorder %s10, 0
    %p30 = por %p28, %p29
    %p31 = scmp.ne.s32.totalorder %s20, %s23
    %p32 = scmp.eq.s32.totalorder %s15, 1
    %p33 = por %p31, %p32
    %p34 = scmp.ne.s32.totalorder %s23, %s24
    %p35 = scmp.eq.s32.totalorder %s15, 0
    %p36 = por %p34, %p35
    %p37 = scmp.ne.s32.totalorder %s23, %s24
    %p38 = scmp.eq.s32.totalorder %s16, 1
    %p39 = por %p37, %p38
    %p41 = scmp.ne.s32.totalorder %s24, %s40
    %p42 = scmp.eq.s32.totalorder %s16, 0
    %p43 = por %p41, %p42
    %s45 = sadd.s32 %s44, 1
    %p48 = scmp.eq.s32.totalorder %s10, 1
    %p49 = scmp.ne.s32.totalorder %s44, %s46
    %p50 = scmp.eq.s32.totalorder %s10, 0
    %p51 = por %p49, %p50
    %p52 = scmp.ne.s32.totalorder %s44, %s46
    %p53 = scmp.eq.s32.totalorder %s15, 1
    %p54 = por %p52, %p53
    %p55 = scmp.ne.s32.totalorder %s46, %s47
    %p56 = scmp.eq.s32.totalorder %s15, 0
    %p57 = por %p55, %p56
    %p58 = scmp.ne.s32.totalorder %s46, %s47
    %p59 = scmp.eq.s32.totalorder %s16, 1
    %p60 = por %p58, %p59
    %p62 = scmp.ne.s32.totalorder %s47, %s61
    %p63 = scmp.eq.s32.totalorder %s16, 0
    %p64 = por %p62, %p63
    %s66 = sadd.s32 %s65, 1
    %p69 = scmp.eq.s32.totalorder %s10, 1
    %p70 = scmp.ne.s32.totalorder %s65, %s67
    %p71 = scmp.eq.s32.totalorder %s10, 0
    %p72 = por %p70, %p71
    %p73 = scmp.ne.s32.totalorder %s65, %s67
    %p74 = scmp.eq.s32.totalorder %s15, 1
    %p75 = por %p73, %p74
    %p76 = scmp.ne.s32.totalorder %s67, %s68
    %p77 = scmp.eq.s32.totalorder %s15, 0
    %p78 = por %p76, %p77
    %p79 = scmp.ne.s32.totalorder %s67, %s68
    %p80 = scmp.eq.s32.totalorder %s16, 1
    %p81 = por %p79, %p80
    %p83 = scmp.ne.s32.totalorder %s68, %s82
    %p84 = scmp.eq.s32.totalorder %s16, 0
    %p85 = por %p83, %p84
    %s87 = sadd.s32 %s86, 1
    %p90 = scmp.eq.s32.totalorder %s10, 1
    %p91 = scmp.ne.s32.totalorder %s86, %s88
    %p92 = scmp.eq.s32.totalorder %s10, 0
    %p93 = por %p91, %p92
    %p94 = scmp.ne.s32.totalorder %s86, %s88
    %p95 = scmp.eq.s32.totalorder %s15, 1
    %p96 = por %p94, %p95
    %p97 = scmp.ne.s32.totalorder %s88, %s89
    %p98 = scmp.eq.s32.totalorder %s15, 0
    %p99 = por %p97, %p98
    %p100 = scmp.ne.s32.totalorder %s88, %s89
    %p101 = scmp.eq.s32.totalorder %s16, 1
    %p102 = por %p100, %p101
    %p104 = scmp.ne.s32.totalorder %s89, %s103
    %p105 = scmp.eq.s32.totalorder %s16, 0
    %p106 = por %p104, %p105
    %s107 = ssub.s32 %s10, %s17
    %p108 = scmp.eq.s32.totalorder %s107, 0
    %s110 = sadd.s32 %s109, 1
    %s111 = scalar_select %p108, %s109, %s110
    %p114 = pneg %p108
    %p115 = scmp.eq.s32.totalorder %s10, 1
    %p116 = por %p114, %p115
    %p117 = scmp.ne.s32.totalorder %s109, %s112
    %p118 = scmp.eq.s32.totalorder %s10, 0
    %p119 = por %p117, %p118
    %p120 = scmp.ne.s32.totalorder %s109, %s112
    %p121 = scmp.eq.s32.totalorder %s15, 1
    %p122 = por %p120, %p121
    %p123 = scmp.ne.s32.totalorder %s112, %s113
    %p124 = scmp.eq.s32.totalorder %s15, 0
    %p125 = por %p123, %p124
    %p126 = scmp.ne.s32.totalorder %s112, %s113
    %p127 = scmp.eq.s32.totalorder %s16, 1
    %p128 = por %p126, %p127
    %p130 = scmp.ne.s32.totalorder %s113, %s129
    %p131 = scmp.eq.s32.totalorder %s16, 0
    %p132 = por %p130, %p131
    %p133 = scmp.le.s32.totalorder 1, %s10
    %p134 = scmp.lt.s32.totalorder %s10, 3
    %p135 = pnand %p133, %p134
    %p136 = pneg %p135
    // Predicated region
    $region9: #{pixel_discriminator_forward.3} parent=5 // pred_check
      _
    $region10: #{pixel_discriminator_forward.3} parent=5 // pred_check_branch
      %138 = sbr.rel (%p135) target = $region12
    $region11: #{pixel_discriminator_forward.3} parent=5 // pred_region
      %s139 = ssub.s32 %s10, 1
      // Predicated region
      $region13: #{pixel_discriminator_forward.3} parent=11 // pred_check
        %p140 = pneg %p57
      $region14: #{pixel_discriminator_forward.3} parent=11 // pred_check_branch
        %142 = sbr.rel (%p140) target = $region16
      $region15: #{pixel_discriminator_forward.3} parent=11 // pred_region
        _
      $region16: #{pixel_discriminator_forward.3} parent=11 // pred_fallthru
        _
      // Predicated region
      $region17: #{pixel_discriminator_forward.3} parent=11 // pred_check
        %p143 = pneg %p78
      $region18: #{pixel_discriminator_forward.3} parent=11 // pred_check_branch
        %145 = sbr.rel (%p143) target = $region20
      $region19: #{pixel_discriminator_forward.3} parent=11 // pred_region
        _
      $region20: #{pixel_discriminator_forward.3} parent=11 // pred_fallthru
        _
      // Predicated region
      $region21: #{pixel_discriminator_forward.3} parent=11 // pred_check
        %p146 = pneg %p99
      $region22: #{pixel_discriminator_forward.3} parent=11 // pred_check_branch
        %148 = sbr.rel (%p146) target = $region24
      $region23: #{pixel_discriminator_forward.3} parent=11 // pred_region
        _
      $region24: #{pixel_discriminator_forward.3} parent=11 // pred_fallthru
        _
    $region12: #{pixel_discriminator_forward.3} parent=5 // pred_fallthru
      _
    %p149 = scmp.lt.s32.totalorder %s10, 2
    // Predicated region
    $region25: #{pixel_discriminator_forward.3} parent=5 // pred_check
      %p150 = pneg %p149
    $region26: #{pixel_discriminator_forward.3} parent=5 // pred_check_branch
      %152 = sbr.rel (%p150) target = $region28
    $region27: #{pixel_discriminator_forward.3} parent=5 // pred_region
      // Predicated region
      $region29: #{pixel_discriminator_forward.3} parent=27 // pred_check
        %p153 = pneg %p30
      $region30: #{pixel_discriminator_forward.3} parent=27 // pred_check_branch
        %155 = sbr.rel (%p153) target = $region32
      $region31: #{pixel_discriminator_forward.3} parent=27 // pred_region
        %s156 = smul.u32 32, %s10
        %p157 = scmp.lt.s32.totalorder %s156, 63
        %s158 = scalar_select %p157, %s156, 63
        %s159 = smul.addr %s158, 8
        %s160 = scalar_lea.vmem %s0, %s159
        %s161 = smul.u32 32, %s10
      $region32: #{pixel_discriminator_forward.3} parent=27 // pred_fallthru
        _
    $region28: #{pixel_discriminator_forward.3} parent=5 // pred_fallthru
      _
    %p162 = scmp.le.s32.totalorder 1, %s10
    %p163 = scmp.lt.s32.totalorder %s10, 3
    %p164 = pnand %p162, %p163
    %p165 = pneg %p164
    // Predicated region
    $region33: #{pixel_discriminator_forward.3} parent=5 // pred_check
      _
    $region34: #{pixel_discriminator_forward.3} parent=5 // pred_check_branch
      %167 = sbr.rel (%p164) target = $region36
    $region35: #{pixel_discriminator_forward.3} parent=5 // pred_region
      %s168 = ssub.s32 %s10, 1
      %s169 = smul.u32 32, %s15
      %p170 = scmp.lt.s32.totalorder %s169, 63
      %s171 = scalar_select %p170, %s169, 63
      %s172 = smul.addr %s171, 8
      %s173 = scalar_lea.vmem %s0, %s172
      %p174 = pneg %p36
      %p175 = pneg %p33
      %p176 = pneg %p57
      %p177 = pneg %p54
      %p178 = pneg %p78
      %p179 = pneg %p75
      %p180 = pneg %p99
      %p181 = pneg %p96
      %p182 = pneg %p125
      %p183 = pneg %p122
      %s184 = smul.u32 32, %s15
      %p185 = scmp.lt.s32.totalorder %s184, 63
      %s186 = scalar_select %p185, %s184, 63
      %s187 = smul.addr %s186, 8
      %s188 = scalar_lea.vmem %s4, %s187
      %s189 = smul.u32 32, %s15
      %p190 = scmp.lt.s32.totalorder %s189, 63
      %s191 = scalar_select %p190, %s189, 63
      %s192 = smul.addr %s191, 8
      %s193 = scalar_lea.vmem %s0, %s192
      %s194 = smul.u32 32, %s15
      %s195 = smul.u32 32, %s15
      %p196 = scmp.lt.s32.totalorder %s195, 63
      %s197 = scalar_select %p196, %s195, 63
      %s198 = smul.addr %s197, 8
      %s199 = scalar_lea.vmem %s4, %s198
      %s200 = smul.u32 32, %s15
      %v202 = vld [vmem:[%s193] sm:$0xff]
      %v203 = vld [vmem:[%s193 + $0x8] sm:$0xff]
      %v204 = vld [vmem:[%s193 + $0x10] sm:$0xff]
      %v205 = vld [vmem:[%s193 + $0x18] sm:$0xff]
      %v206 = vld [vmem:[%s193 + $0x20] sm:$0xff]
      %v207 = vld [vmem:[%s193 + $0x28] sm:$0xff]
      %v208 = vld [vmem:[%s193 + $0x30] sm:$0xff]
      %v209 = vld [vmem:[%s193 + $0x38] sm:$0xff]
      %v210 = vld [vmem:[%s193 + $0x40] sm:$0xff]
      %v211 = vld [vmem:[%s193 + $0x48] sm:$0xff]
      %v212 = vld [vmem:[%s193 + $0x50] sm:$0xff]
      %v213 = vld [vmem:[%s193 + $0x58] sm:$0xff]
      %v214 = vld [vmem:[%s193 + $0x60] sm:$0xff]
      %v215 = vld [vmem:[%s193 + $0x68] sm:$0xff]
      %v216 = vld [vmem:[%s193 + $0x70] sm:$0xff]
      %v217 = vld [vmem:[%s193 + $0x78] sm:$0xff]
      %v218 = vld [vmem:[%s193 + $0x80] sm:$0xff]
      %v219 = vld [vmem:[%s193 + $0x88] sm:$0xff]
      %v220 = vld [vmem:[%s193 + $0x90] sm:$0xff]
      %v221 = vld [vmem:[%s193 + $0x98] sm:$0xff]
      %v222 = vld [vmem:[%s193 + $0xa0] sm:$0xff]
      %v223 = vld [vmem:[%s193 + $0xa8] sm:$0xff]
      %v224 = vld [vmem:[%s193 + $0xb0] sm:$0xff]
      %v225 = vld [vmem:[%s193 + $0xb8] sm:$0xff]
      %v226 = vld [vmem:[%s193 + $0xc0] sm:$0xff]
      %v227 = vld [vmem:[%s193 + $0xc8] sm:$0xff]
      %v228 = vld [vmem:[%s193 + $0xd0] sm:$0xff]
      %v229 = vld [vmem:[%s193 + $0xd8] sm:$0xff]
      %v230 = vld [vmem:[%s193 + $0xe0] sm:$0xff]
      %v231 = vld [vmem:[%s193 + $0xe8] sm:$0xff]
      %v232 = vld [vmem:[%s193 + $0xf0] sm:$0xff]
      %v233 = vld [vmem:[%s193 + $0xf8] sm:$0xff]
      %v234 = vld [vmem:[%s1] sm:$0x1]
      %v236 = vlaneseq
      %v237 = vshrl.u32 %v236, 7
      %v238 = vsub.s32 0, %v237
      %v239 = vrot.slane %v234, %v238
      %v241 = vmul.f32 %v202, %v239
      %v242 = vmul.f32 %v203, %v239
      %v243 = vmul.f32 %v204, %v239
      %v244 = vmul.f32 %v205, %v239
      %v245 = vmul.f32 %v206, %v239
      %v246 = vmul.f32 %v207, %v239
      %v247 = vmul.f32 %v208, %v239
      %v248 = vmul.f32 %v209, %v239
      %v249 = vmul.f32 %v210, %v239
      %v250 = vmul.f32 %v211, %v239
      %v251 = vmul.f32 %v212, %v239
      %v252 = vmul.f32 %v213, %v239
      %v253 = vmul.f32 %v214, %v239
      %v254 = vmul.f32 %v215, %v239
      %v255 = vmul.f32 %v216, %v239
      %v256 = vmul.f32 %v217, %v239
      %v257 = vmul.f32 %v218, %v239
      %v258 = vmul.f32 %v219, %v239
      %v259 = vmul.f32 %v220, %v239
      %v260 = vmul.f32 %v221, %v239
      %v261 = vmul.f32 %v222, %v239
      %v262 = vmul.f32 %v223, %v239
      %v263 = vmul.f32 %v224, %v239
      %v264 = vmul.f32 %v225, %v239
      %v265 = vmul.f32 %v226, %v239
      %v266 = vmul.f32 %v227, %v239
      %v267 = vmul.f32 %v228, %v239
      %v268 = vmul.f32 %v229, %v239
      %v269 = vmul.f32 %v230, %v239
      %v270 = vmul.f32 %v231, %v239
      %v271 = vmul.f32 %v232, %v239
      %v272 = vmul.f32 %v233, %v239
      %v273 = vld [vmem:[%s2] sm:$0x1]
      %v275 = vlaneseq
      %v276 = vshrl.u32 %v275, 7
      %v277 = vsub.s32 0, %v276
      %v278 = vrot.slane %v273, %v277
      %v280 = vadd.f32 %v241, %v278
      %v281 = vadd.f32 %v242, %v278
      %v282 = vadd.f32 %v243, %v278
      %v283 = vadd.f32 %v244, %v278
      %v284 = vadd.f32 %v245, %v278
      %v285 = vadd.f32 %v246, %v278
      %v286 = vadd.f32 %v247, %v278
      %v287 = vadd.f32 %v248, %v278
      %v288 = vadd.f32 %v249, %v278
      %v289 = vadd.f32 %v250, %v278
      %v290 = vadd.f32 %v251, %v278
      %v291 = vadd.f32 %v252, %v278
      %v292 = vadd.f32 %v253, %v278
      %v293 = vadd.f32 %v254, %v278
      %v294 = vadd.f32 %v255, %v278
      %v295 = vadd.f32 %v256, %v278
      %v296 = vadd.f32 %v257, %v278
      %v297 = vadd.f32 %v258, %v278
      %v298 = vadd.f32 %v259, %v278
      %v299 = vadd.f32 %v260, %v278
      %v300 = vadd.f32 %v261, %v278
      %v301 = vadd.f32 %v262, %v278
      %v302 = vadd.f32 %v263, %v278
      %v303 = vadd.f32 %v264, %v278
      %v304 = vadd.f32 %v265, %v278
      %v305 = vadd.f32 %v266, %v278
      %v306 = vadd.f32 %v267, %v278
      %v307 = vadd.f32 %v268, %v278
      %v308 = vadd.f32 %v269, %v278
      %v309 = vadd.f32 %v270, %v278
      %v310 = vadd.f32 %v271, %v278
      %v311 = vadd.f32 %v272, %v278
      %v312 = vmul.f32 %v280, 0.2
      %v313 = vmul.f32 %v281, 0.2
      %v314 = vmul.f32 %v282, 0.2
      %v315 = vmul.f32 %v283, 0.2
      %v316 = vmul.f32 %v284, 0.2
      %v317 = vmul.f32 %v285, 0.2
      %v318 = vmul.f32 %v286, 0.2
      %v319 = vmul.f32 %v287, 0.2
      %v320 = vmul.f32 %v288, 0.2
      %v321 = vmul.f32 %v289, 0.2
      %v322 = vmul.f32 %v290, 0.2
      %v323 = vmul.f32 %v291, 0.2
      %v324 = vmul.f32 %v292, 0.2
      %v325 = vmul.f32 %v293, 0.2
      %v326 = vmul.f32 %v294, 0.2
      %v327 = vmul.f32 %v295, 0.2
      %v328 = vmul.f32 %v296, 0.2
      %v329 = vmul.f32 %v297, 0.2
      %v330 = vmul.f32 %v298, 0.2
      %v331 = vmul.f32 %v299, 0.2
      %v332 = vmul.f32 %v300, 0.2
      %v333 = vmul.f32 %v301, 0.2
      %v334 = vmul.f32 %v302, 0.2
      %v335 = vmul.f32 %v303, 0.2
      %v336 = vmul.f32 %v304, 0.2
      %v337 = vmul.f32 %v305, 0.2
      %v338 = vmul.f32 %v306, 0.2
      %v339 = vmul.f32 %v307, 0.2
      %v340 = vmul.f32 %v308, 0.2
      %v341 = vmul.f32 %v309, 0.2
      %v342 = vmul.f32 %v310, 0.2
      %v343 = vmul.f32 %v311, 0.2
      %v344 = vmax.f32 %v280, %v312
      %v345 = vmax.f32 %v281, %v313
      %v346 = vmax.f32 %v282, %v314
      %v347 = vmax.f32 %v283, %v315
      %v348 = vmax.f32 %v284, %v316
      %v349 = vmax.f32 %v285, %v317
      %v350 = vmax.f32 %v286, %v318
      %v351 = vmax.f32 %v287, %v319
      %v352 = vmax.f32 %v288, %v320
      %v353 = vmax.f32 %v289, %v321
      %v354 = vmax.f32 %v290, %v322
      %v355 = vmax.f32 %v291, %v323
      %v356 = vmax.f32 %v292, %v324
      %v357 = vmax.f32 %v293, %v325
      %v358 = vmax.f32 %v294, %v326
      %v359 = vmax.f32 %v295, %v327
      %v360 = vmax.f32 %v296, %v328
      %v361 = vmax.f32 %v297, %v329
      %v362 = vmax.f32 %v298, %v330
      %v363 = vmax.f32 %v299, %v331
      %v364 = vmax.f32 %v300, %v332
      %v365 = vmax.f32 %v301, %v333
      %v366 = vmax.f32 %v302, %v334
      %v367 = vmax.f32 %v303, %v335
      %v368 = vmax.f32 %v304, %v336
      %v369 = vmax.f32 %v305, %v337
      %v370 = vmax.f32 %v306, %v338
      %v371 = vmax.f32 %v307, %v339
      %v372 = vmax.f32 %v308, %v340
      %v373 = vmax.f32 %v309, %v341
      %v374 = vmax.f32 %v310, %v342
      %v375 = vmax.f32 %v311, %v343
      %v376 = vpack.c.bf16 %v345, %v344
      %v377 = vpack.c.bf16 %v347, %v346
      %v378 = vpack.c.bf16 %v349, %v348
      %v379 = vpack.c.bf16 %v351, %v350
      %v380 = vpack.c.bf16 %v353, %v352
      %v381 = vpack.c.bf16 %v355, %v354
      %v382 = vpack.c.bf16 %v357, %v356
      %v383 = vpack.c.bf16 %v359, %v358
      %v384 = vpack.c.bf16 %v361, %v360
      %v385 = vpack.c.bf16 %v363, %v362
      %v386 = vpack.c.bf16 %v365, %v364
      %v387 = vpack.c.bf16 %v367, %v366
      %v388 = vpack.c.bf16 %v369, %v368
      %v389 = vpack.c.bf16 %v371, %v370
      %v390 = vpack.c.bf16 %v373, %v372
      %v391 = vpack.c.bf16 %v375, %v374
      %v392 = vld [vmem:[%s3] sm:$0xf]
      %v393 = vld [vmem:[%s3 + $0x4] sm:$0xf]
      %v394 = vld [vmem:[%s3 + $0x8] sm:$0xf]
      %v395 = vld [vmem:[%s3 + $0xc] sm:$0xf]
      %v396 = vld [vmem:[%s3 + $0x10] sm:$0xf]
      %v397 = vld [vmem:[%s3 + $0x14] sm:$0xf]
      %v398 = vld [vmem:[%s3 + $0x18] sm:$0xf]
      %v399 = vld [vmem:[%s3 + $0x1c] sm:$0xf]
      %v400 = vld [vmem:[%s3 + $0x20] sm:$0xf]
      %v401 = vld [vmem:[%s3 + $0x24] sm:$0xf]
      %v402 = vld [vmem:[%s3 + $0x28] sm:$0xf]
      %v403 = vld [vmem:[%s3 + $0x2c] sm:$0xf]
      %v404 = vld [vmem:[%s3 + $0x30] sm:$0xf]
      %v405 = vld [vmem:[%s3 + $0x34] sm:$0xf]
      %v406 = vld [vmem:[%s3 + $0x38] sm:$0xf]
      %v407 = vld [vmem:[%s3 + $0x3c] sm:$0xf]
      %v424 = vunpack.c.l.b16 %v392
      %v425 = vunpack.c.l.b16 %v393
      %v426 = vunpack.c.l.b16 %v394
      %v427 = vunpack.c.l.b16 %v395
      %v428 = vunpack.c.l.b16 %v396
      %v429 = vunpack.c.l.b16 %v397
      %v430 = vunpack.c.l.b16 %v398
      %v431 = vunpack.c.l.b16 %v399
      %v432 = vunpack.c.l.b16 %v400
      %v433 = vunpack.c.l.b16 %v401
      %v434 = vunpack.c.l.b16 %v402
      %v435 = vunpack.c.l.b16 %v403
      %v436 = vunpack.c.l.b16 %v404
      %v437 = vunpack.c.l.b16 %v405
      %v438 = vunpack.c.l.b16 %v406
      %v439 = vunpack.c.l.b16 %v407
      %v440 = vpack.c.b16 %v425, %v424
      %v441 = vpack.c.b16 %v427, %v426
      %v442 = vpack.c.b16 %v429, %v428
      %v443 = vpack.c.b16 %v431, %v430
      %v444 = vpack.c.b16 %v433, %v432
      %v445 = vpack.c.b16 %v435, %v434
      %v446 = vpack.c.b16 %v437, %v436
      %v447 = vpack.c.b16 %v439, %v438
      %456 = vmatprep.subr.bf16.mxu0 0
      %457 = vmatpush1.bf16.msra.mxu0 %v447
      %458 = vmatprep.subr.bf16.mxu0 0
      %459 = vmatpush1.bf16.msra.mxu0 %v446
      %460 = vmatprep.subr.bf16.mxu0 0
      %461 = vmatpush1.bf16.msra.mxu0 %v445
      %462 = vmatprep.subr.bf16.mxu0 0
      %463 = vmatpush1.bf16.msra.mxu0 %v444
      %464 = vmatprep.subr.bf16.mxu0 0
      %465 = vmatpush1.bf16.msra.mxu0 %v443
      %466 = vmatprep.subr.bf16.mxu0 0
      %467 = vmatpush1.bf16.msra.mxu0 %v442
      %468 = vmatprep.subr.bf16.mxu0 0
      %469 = vmatpush1.bf16.msra.mxu0 %v441
      %470 = vmatprep.subr.bf16.mxu0 0
      %471 = vmatpush1.bf16.msra.mxu0 %v440
      %472 = vmatprep.subr.bf16.mxu0 0
      %473 = vmatpush2.bf16.msra.mxu0 0
      %474 = vmatprep.subr.bf16.mxu0 0
      %475 = vmatpush2.bf16.msra.mxu0 0
      %476 = vmatprep.subr.bf16.mxu0 0
      %477 = vmatpush2.bf16.msra.mxu0 0
      %478 = vmatprep.subr.bf16.mxu0 0
      %479 = vmatpush2.bf16.msra.mxu0 0
      %480 = vmatprep.subr.bf16.mxu0 0
      %481 = vmatpush2.bf16.msra.mxu0 0
      %482 = vmatprep.subr.bf16.mxu0 0
      %483 = vmatpush2.bf16.msra.mxu0 0
      %484 = vmatprep.subr.bf16.mxu0 0
      %485 = vmatpush2.bf16.msra.mxu0 0
      %486 = vmatprep.subr.bf16.mxu0 0
      %487 = vmatpush2.bf16.msra.mxu0 0
      %488 = vmatprep.mubr.bf16.mxu0 0
      %489 = vmatmul.mubr.bf16.gmra.mxu0 %v376
      %v490 = vpop.f32.mrf.mxu0
      %v491 = vadd.f32 0.0, %v490
      %v492 = vpop.f32.mrf.mxu0
      %v493 = vpop.f32.mrf.mxu0
      %v494 = vadd.f32 0.0, %v493
      %v495 = vpop.f32.mrf.mxu0
      %496 = vmatprep.mubr.bf16.mxu0 0
      %497 = vmatmul.mubr.bf16.gmra.mxu0 %v377
      %v498 = vpop.f32.mrf.mxu0
      %v499 = vadd.f32 0.0, %v498
      %v500 = vpop.f32.mrf.mxu0
      %v501 = vpop.f32.mrf.mxu0
      %v502 = vadd.f32 0.0, %v501
      %v503 = vpop.f32.mrf.mxu0
      %504 = vmatprep.mubr.bf16.mxu0 0
      %505 = vmatmul.mubr.bf16.gmra.mxu0 %v378
      %v506 = vpop.f32.mrf.mxu0
      %v507 = vadd.f32 0.0, %v506
      %v508 = vpop.f32.mrf.mxu0
      %v509 = vpop.f32.mrf.mxu0
      %v510 = vadd.f32 0.0, %v509
      %v511 = vpop.f32.mrf.mxu0
      %512 = vmatprep.mubr.bf16.mxu0 0
      %513 = vmatmul.mubr.bf16.gmra.mxu0 %v379
      %v514 = vpop.f32.mrf.mxu0
      %v515 = vadd.f32 0.0, %v514
      %v516 = vpop.f32.mrf.mxu0
      %v517 = vpop.f32.mrf.mxu0
      %v518 = vadd.f32 0.0, %v517
      %v519 = vpop.f32.mrf.mxu0
      %520 = vmatprep.mubr.bf16.mxu0 0
      %521 = vmatmul.mubr.bf16.gmra.mxu0 %v380
      %v522 = vpop.f32.mrf.mxu0
      %v523 = vadd.f32 0.0, %v522
      %v524 = vpop.f32.mrf.mxu0
      %v525 = vpop.f32.mrf.mxu0
      %v526 = vadd.f32 0.0, %v525
      %v527 = vpop.f32.mrf.mxu0
      %528 = vmatprep.mubr.bf16.mxu0 0
      %529 = vmatmul.mubr.bf16.gmra.mxu0 %v381
      %v530 = vpop.f32.mrf.mxu0
      %v531 = vadd.f32 0.0, %v530
      %v532 = vpop.f32.mrf.mxu0
      %v533 = vpop.f32.mrf.mxu0
      %v534 = vadd.f32 0.0, %v533
      %v535 = vpop.f32.mrf.mxu0
      %536 = vmatprep.mubr.bf16.mxu0 0
      %537 = vmatmul.mubr.bf16.gmra.mxu0 %v382
      %v538 = vpop.f32.mrf.mxu0
      %v539 = vadd.f32 0.0, %v538
      %v540 = vpop.f32.mrf.mxu0
      %v541 = vpop.f32.mrf.mxu0
      %v542 = vadd.f32 0.0, %v541
      %v543 = vpop.f32.mrf.mxu0
      %544 = vmatprep.mubr.bf16.mxu0 0
      %545 = vmatmul.mubr.bf16.gmra.mxu0 %v383
      %v546 = vpop.f32.mrf.mxu0
      %v547 = vadd.f32 0.0, %v546
      %v548 = vpop.f32.mrf.mxu0
      %v549 = vpop.f32.mrf.mxu0
      %v550 = vadd.f32 0.0, %v549
      %v551 = vpop.f32.mrf.mxu0
      %552 = vmatprep.mubr.bf16.mxu0 0
      %553 = vmatmul.mubr.bf16.gmra.mxu0 %v384
      %v554 = vpop.f32.mrf.mxu0
      %v555 = vadd.f32 0.0, %v554
      %v556 = vpop.f32.mrf.mxu0
      %v557 = vpop.f32.mrf.mxu0
      %v558 = vadd.f32 0.0, %v557
      %v559 = vpop.f32.mrf.mxu0
      %560 = vmatprep.mubr.bf16.mxu0 0
      %561 = vmatmul.mubr.bf16.gmra.mxu0 %v385
      %v562 = vpop.f32.mrf.mxu0
      %v563 = vadd.f32 0.0, %v562
      %v564 = vpop.f32.mrf.mxu0
      %v565 = vpop.f32.mrf.mxu0
      %v566 = vadd.f32 0.0, %v565
      %v567 = vpop.f32.mrf.mxu0
      %568 = vmatprep.mubr.bf16.mxu0 0
      %569 = vmatmul.mubr.bf16.gmra.mxu0 %v386
      %v570 = vpop.f32.mrf.mxu0
      %v571 = vadd.f32 0.0, %v570
      %v572 = vpop.f32.mrf.mxu0
      %v573 = vpop.f32.mrf.mxu0
      %v574 = vadd.f32 0.0, %v573
      %v575 = vpop.f32.mrf.mxu0
      %576 = vmatprep.mubr.bf16.mxu0 0
      %577 = vmatmul.mubr.bf16.gmra.mxu0 %v387
      %v578 = vpop.f32.mrf.mxu0
      %v579 = vadd.f32 0.0, %v578
      %v580 = vpop.f32.mrf.mxu0
      %v581 = vpop.f32.mrf.mxu0
      %v582 = vadd.f32 0.0, %v581
      %v583 = vpop.f32.mrf.mxu0
      %584 = vmatprep.mubr.bf16.mxu0 0
      %585 = vmatmul.mubr.bf16.gmra.mxu0 %v388
      %v586 = vpop.f32.mrf.mxu0
      %v587 = vadd.f32 0.0, %v586
      %v588 = vpop.f32.mrf.mxu0
      %v589 = vpop.f32.mrf.mxu0
      %v590 = vadd.f32 0.0, %v589
      %v591 = vpop.f32.mrf.mxu0
      %592 = vmatprep.mubr.bf16.mxu0 0
      %593 = vmatmul.mubr.bf16.gmra.mxu0 %v389
      %v594 = vpop.f32.mrf.mxu0
      %v595 = vadd.f32 0.0, %v594
      %v596 = vpop.f32.mrf.mxu0
      %v597 = vpop.f32.mrf.mxu0
      %v598 = vadd.f32 0.0, %v597
      %v599 = vpop.f32.mrf.mxu0
      %600 = vmatprep.mubr.bf16.mxu0 0
      %601 = vmatmul.mubr.bf16.gmra.mxu0 %v390
      %v602 = vpop.f32.mrf.mxu0
      %v603 = vadd.f32 0.0, %v602
      %v604 = vpop.f32.mrf.mxu0
      %v605 = vpop.f32.mrf.mxu0
      %v606 = vadd.f32 0.0, %v605
      %v607 = vpop.f32.mrf.mxu0
      %608 = vmatprep.mubr.bf16.mxu0 0
      %609 = vmatmul.mubr.bf16.gmra.mxu0 %v391
      %v610 = vpop.f32.mrf.mxu0
      %v611 = vadd.f32 0.0, %v610
      %v612 = vpop.f32.mrf.mxu0
      %v613 = vpop.f32.mrf.mxu0
      %v614 = vadd.f32 0.0, %v613
      %v615 = vpop.f32.mrf.mxu0
      %616 = vdwg.mxu0
      %617 = vst [vmem:[%s199] sm:$0xff] %v491
      %618 = vst [vmem:[%s199 + $0x8] sm:$0xff] %v494
      %619 = vst [vmem:[%s199 + $0x10] sm:$0xff] %v499
      %620 = vst [vmem:[%s199 + $0x18] sm:$0xff] %v502
      %621 = vst [vmem:[%s199 + $0x20] sm:$0xff] %v507
      %622 = vst [vmem:[%s199 + $0x28] sm:$0xff] %v510
      %623 = vst [vmem:[%s199 + $0x30] sm:$0xff] %v515
      %624 = vst [vmem:[%s199 + $0x38] sm:$0xff] %v518
      %625 = vst [vmem:[%s199 + $0x40] sm:$0xff] %v523
      %626 = vst [vmem:[%s199 + $0x48] sm:$0xff] %v526
      %627 = vst [vmem:[%s199 + $0x50] sm:$0xff] %v531
      %628 = vst [vmem:[%s199 + $0x58] sm:$0xff] %v534
      %629 = vst [vmem:[%s199 + $0x60] sm:$0xff] %v539
      %630 = vst [vmem:[%s199 + $0x68] sm:$0xff] %v542
      %631 = vst [vmem:[%s199 + $0x70] sm:$0xff] %v547
      %632 = vst [vmem:[%s199 + $0x78] sm:$0xff] %v550
      %633 = vst [vmem:[%s199 + $0x80] sm:$0xff] %v555
      %634 = vst [vmem:[%s199 + $0x88] sm:$0xff] %v558
      %635 = vst [vmem:[%s199 + $0x90] sm:$0xff] %v563
      %636 = vst [vmem:[%s199 + $0x98] sm:$0xff] %v566
      %637 = vst [vmem:[%s199 + $0xa0] sm:$0xff] %v571
      %638 = vst [vmem:[%s199 + $0xa8] sm:$0xff] %v574
      %639 = vst [vmem:[%s199 + $0xb0] sm:$0xff] %v579
      %640 = vst [vmem:[%s199 + $0xb8] sm:$0xff] %v582
      %641 = vst [vmem:[%s199 + $0xc0] sm:$0xff] %v587
      %642 = vst [vmem:[%s199 + $0xc8] sm:$0xff] %v590
      %643 = vst [vmem:[%s199 + $0xd0] sm:$0xff] %v595
      %644 = vst [vmem:[%s199 + $0xd8] sm:$0xff] %v598
      %645 = vst [vmem:[%s199 + $0xe0] sm:$0xff] %v603
      %646 = vst [vmem:[%s199 + $0xe8] sm:$0xff] %v606
      %647 = vst [vmem:[%s199 + $0xf0] sm:$0xff] %v611
      %648 = vst [vmem:[%s199 + $0xf8] sm:$0xff] %v614
      %s649 = smul.u32 32, %s15
      %p650 = scmp.lt.s32.totalorder %s649, 63
      %s651 = scalar_select %p650, %s649, 63
      %s652 = smul.addr %s651, 8
      %s653 = scalar_lea.vmem %s4, %s652
      // Predicated region
      $region37: #{pixel_discriminator_forward.3} parent=35 // pred_check
        %p654 = pneg %p122
      $region38: #{pixel_discriminator_forward.3} parent=35 // pred_check_branch
        %656 = sbr.rel (%p654) target = $region40
      $region39: #{pixel_discriminator_forward.3} parent=35 // pred_region
        %s657 = smul.u32 32, %s15
      $region40: #{pixel_discriminator_forward.3} parent=35 // pred_fallthru
        _
    $region36: #{pixel_discriminator_forward.3} parent=5 // pred_fallthru
      _
    %p658 = scmp.le.s32.totalorder 2, %s10
    // Predicated region
    $region41: #{pixel_discriminator_forward.3} parent=5 // pred_check
      %p659 = pneg %p658
    $region42: #{pixel_discriminator_forward.3} parent=5 // pred_check_branch
      %661 = sbr.rel (%p659) target = $region44
    $region43: #{pixel_discriminator_forward.3} parent=5 // pred_region
      %s662 = ssub.s32 %s10, 2
      // Predicated region
      $region45: #{pixel_discriminator_forward.3} parent=43 // pred_check
        %p663 = pneg %p128
      $region46: #{pixel_discriminator_forward.3} parent=43 // pred_check_branch
        %665 = sbr.rel (%p663) target = $region48
      $region47: #{pixel_discriminator_forward.3} parent=43 // pred_region
        %s666 = smul.u32 32, %s16
        %p667 = scmp.lt.s32.totalorder %s666, 63
        %s668 = scalar_select %p667, %s666, 63
        %s669 = smul.addr %s668, 8
        %s670 = scalar_lea.vmem %s4, %s669
      $region48: #{pixel_discriminator_forward.3} parent=43 // pred_fallthru
        _
    $region44: #{pixel_discriminator_forward.3} parent=5 // pred_fallthru
      _
  $region6: #{pixel_discriminator_forward.3} parent=0 // loop_footer
    %s14 = sadd.s32 1, %s10
  $region7: #{pixel_discriminator_forward.3} parent=0 // loop_footer_branch
    %9 = sbr.rel target = $region3
  $region8: #{pixel_discriminator_forward.3} parent=0 // loop_exit
    _

// kernel: pixel_discriminator_forward.2
$region0: #{pixel_discriminator_forward.2}
  #allocation0 [shape = 'u32[]', space=smem, size = 0x4, offset = 0x4, fixed_abs, tag = 'smem constant byte address 0x4 - core index']
  #allocation1 [shape = 'u32[144,128]{1,0:T(1,128)}', space=vmem, size = 0x12000, scoped, tag = 'internal scratch']
  %s0 = inlined_call_operand.vmem [shape: bf16[512,128], index: 0, kind: input, shape index: {}]
  %s1 = inlined_call_operand.vmem [shape: bf16[128,128], index: 1, kind: input, shape index: {}]
  %s2 = inlined_call_operand.vmem [shape: f32[1,128], index: 2, kind: input, shape index: {}]
  %s3 = inlined_call_operand.vmem [shape: bf16[128,128], index: 3, kind: input, shape index: {}]
  %s4 = inlined_call_operand.vmem [shape: f32[512,128], index: 4, kind: output, shape index: {0}]
  %s5 = inlined_call_operand.vmem [shape: f32[1,128], index: 5, kind: output, shape index: {1}]
  %s6 = inlined_call_operand.vmem [shape: f32[1,128], index: 6, kind: output, shape index: {2}]
  %7 = xla_tuple %s4, %s5, %s6
  %s8 = sld [smem:[#allocation0]]
  $region69: #{pixel_discriminator_forward.2} parent=0
    _
  %s10 = ssub.s32 1, %s8
  %s11 = scalar_select 0, %s10, %s8
  loop: start=0, step=1, limit=4
  $region2: #{pixel_discriminator_forward.2} parent=0 // loop_pre_header
    _
  $region3: #{pixel_discriminator_forward.2} parent=0 // loop_header
    %s13 = sphi 0, %s17
    %p14 = scmp.ge.s32.totalorder %s13, 4
    %s23 = sphi 0, %s25
    %s26 = sphi 0, %s23
    %s27 = sphi 0, %s26
    %s43 = sphi 0, %s27
    %s47 = sphi 0, %s47
    %s49 = sphi 0, %s47
    %s50 = sphi 0, %s49
    %s64 = sphi 0, %s50
    %s68 = sphi 0, %s68
    %s70 = sphi 0, %s68
    %s71 = sphi 0, %s70
    %s85 = sphi 0, %s71
    %s89 = sphi 0, %s89
    %s91 = sphi 0, %s89
    %s92 = sphi 0, %s91
    %s106 = sphi 0, %s92
    %s112 = sphi 0, %s114
    %s115 = sphi 0, %s112
    %s116 = sphi 0, %s115
    %s132 = sphi 0, %s116
    %s136 = sphi 0, %s136
    %s138 = sphi 0, %s136
    %s139 = sphi 0, %s138
    %s153 = sphi 0, %s139
    %s157 = sphi 0, %s157
    %s159 = sphi 0, %s157
    %s160 = sphi 0, %s159
    %s174 = sphi 0, %s160
  $region4: #{pixel_discriminator_forward.2} parent=0 // loop_header_branch
    %16 = sbr.rel (%p14) target = $region8
  $region5: #{pixel_discriminator_forward.2} parent=0 // loop_body
    %s18 = ssub.s32 %s13, 1
    %s19 = ssub.s32 %s13, 2
    %s20 = sadd.s32 %s13, 1
    %s21 = ssub.s32 %s13, %s20
    %p22 = scmp.eq.s32.totalorder %s21, 0
    %s24 = sadd.s32 %s23, 1
    %s25 = scalar_select %p22, %s23, %s24
    %p28 = pneg %p22
    %p29 = scmp.eq.s32.totalorder %s13, 1
    %p30 = por %p28, %p29
    %p31 = scmp.ne.s32.totalorder %s23, %s26
    %p32 = scmp.eq.s32.totalorder %s13, 0
    %p33 = por %p31, %p32
    %p34 = scmp.ne.s32.totalorder %s23, %s26
    %p35 = scmp.eq.s32.totalorder %s18, 1
    %p36 = por %p34, %p35
    %p37 = scmp.ne.s32.totalorder %s26, %s27
    %p38 = scmp.eq.s32.totalorder %s18, 0
    %p39 = por %p37, %p38
    %p40 = scmp.ne.s32.totalorder %s26, %s27
    %p41 = scmp.eq.s32.totalorder %s19, 1
    %p42 = por %p40, %p41
    %p44 = scmp.ne.s32.totalorder %s27, %s43
    %p45 = scmp.eq.s32.totalorder %s19, 0
    %p46 = por %p44, %p45
    %s48 = sadd.s32 %s47, 1
    %p51 = scmp.eq.s32.totalorder %s13, 1
    %p52 = scmp.ne.s32.totalorder %s47, %s49
    %p53 = scmp.eq.s32.totalorder %s13, 0
    %p54 = por %p52, %p53
    %p55 = scmp.ne.s32.totalorder %s47, %s49
    %p56 = scmp.eq.s32.totalorder %s18, 1
    %p57 = por %p55, %p56
    %p58 = scmp.ne.s32.totalorder %s49, %s50
    %p59 = scmp.eq.s32.totalorder %s18, 0
    %p60 = por %p58, %p59
    %p61 = scmp.ne.s32.totalorder %s49, %s50
    %p62 = scmp.eq.s32.totalorder %s19, 1
    %p63 = por %p61, %p62
    %p65 = scmp.ne.s32.totalorder %s50, %s64
    %p66 = scmp.eq.s32.totalorder %s19, 0
    %p67 = por %p65, %p66
    %s69 = sadd.s32 %s68, 1
    %p72 = scmp.eq.s32.totalorder %s13, 1
    %p73 = scmp.ne.s32.totalorder %s68, %s70
    %p74 = scmp.eq.s32.totalorder %s13, 0
    %p75 = por %p73, %p74
    %p76 = scmp.ne.s32.totalorder %s68, %s70
    %p77 = scmp.eq.s32.totalorder %s18, 1
    %p78 = por %p76, %p77
    %p79 = scmp.ne.s32.totalorder %s70, %s71
    %p80 = scmp.eq.s32.totalorder %s18, 0
    %p81 = por %p79, %p80
    %p82 = scmp.ne.s32.totalorder %s70, %s71
    %p83 = scmp.eq.s32.totalorder %s19, 1
    %p84 = por %p82, %p83
    %p86 = scmp.ne.s32.totalorder %s71, %s85
    %p87 = scmp.eq.s32.totalorder %s19, 0
    %p88 = por %p86, %p87
    %s90 = sadd.s32 %s89, 1
    %p93 = scmp.eq.s32.totalorder %s13, 1
    %p94 = scmp.ne.s32.totalorder %s89, %s91
    %p95 = scmp.eq.s32.totalorder %s13, 0
    %p96 = por %p94, %p95
    %p97 = scmp.ne.s32.totalorder %s89, %s91
    %p98 = scmp.eq.s32.totalorder %s18, 1
    %p99 = por %p97, %p98
    %p100 = scmp.ne.s32.totalorder %s91, %s92
    %p101 = scmp.eq.s32.totalorder %s18, 0
    %p102 = por %p100, %p101
    %p103 = scmp.ne.s32.totalorder %s91, %s92
    %p104 = scmp.eq.s32.totalorder %s19, 1
    %p105 = por %p103, %p104
    %p107 = scmp.ne.s32.totalorder %s92, %s106
    %p108 = scmp.eq.s32.totalorder %s19, 0
    %p109 = por %p107, %p108
    %s110 = ssub.s32 %s13, %s20
    %p111 = scmp.eq.s32.totalorder %s110, 0
    %s113 = sadd.s32 %s112, 1
    %s114 = scalar_select %p111, %s112, %s113
    %p117 = pneg %p111
    %p118 = scmp.eq.s32.totalorder %s13, 1
    %p119 = por %p117, %p118
    %p120 = scmp.ne.s32.totalorder %s112, %s115
    %p121 = scmp.eq.s32.totalorder %s13, 0
    %p122 = por %p120, %p121
    %p123 = scmp.ne.s32.totalorder %s112, %s115
    %p124 = scmp.eq.s32.totalorder %s18, 1
    %p125 = por %p123, %p124
    %p126 = scmp.ne.s32.totalorder %s115, %s116
    %p127 = scmp.eq.s32.totalorder %s18, 0
    %p128 = por %p126, %p127
    %p129 = scmp.ne.s32.totalorder %s115, %s116
    %p130 = scmp.eq.s32.totalorder %s19, 1
    %p131 = por %p129, %p130
    %p133 = scmp.ne.s32.totalorder %s116, %s132
    %p134 = scmp.eq.s32.totalorder %s19, 0
    %p135 = por %p133, %p134
    %s137 = sadd.s32 %s136, 1
    %p140 = scmp.eq.s32.totalorder %s13, 1
    %p141 = scmp.ne.s32.totalorder %s136, %s138
    %p142 = scmp.eq.s32.totalorder %s13, 0
    %p143 = por %p141, %p142
    %p144 = scmp.ne.s32.totalorder %s136, %s138
    %p145 = scmp.eq.s32.totalorder %s18, 1
    %p146 = por %p144, %p145
    %p147 = scmp.ne.s32.totalorder %s138, %s139
    %p148 = scmp.eq.s32.totalorder %s18, 0
    %p149 = por %p147, %p148
    %p150 = scmp.ne.s32.totalorder %s138, %s139
    %p151 = scmp.eq.s32.totalorder %s19, 1
    %p152 = por %p150, %p151
    %p154 = scmp.ne.s32.totalorder %s139, %s153
    %p155 = scmp.eq.s32.totalorder %s19, 0
    %p156 = por %p154, %p155
    %s158 = sadd.s32 %s157, 1
    %p161 = scmp.eq.s32.totalorder %s13, 1
    %p162 = scmp.ne.s32.totalorder %s157, %s159
    %p163 = scmp.eq.s32.totalorder %s13, 0
    %p164 = por %p162, %p163
    %p165 = scmp.ne.s32.totalorder %s157, %s159
    %p166 = scmp.eq.s32.totalorder %s18, 1
    %p167 = por %p165, %p166
    %p168 = scmp.ne.s32.totalorder %s159, %s160
    %p169 = scmp.eq.s32.totalorder %s18, 0
    %p170 = por %p168, %p169
    %p171 = scmp.ne.s32.totalorder %s159, %s160
    %p172 = scmp.eq.s32.totalorder %s19, 1
    %p173 = por %p171, %p172
    %p175 = scmp.ne.s32.totalorder %s160, %s174
    %p176 = scmp.eq.s32.totalorder %s19, 0
    %p177 = por %p175, %p176
    %p178 = scmp.le.s32.totalorder 1, %s13
    %p179 = scmp.lt.s32.totalorder %s13, 3
    %p180 = pnand %p178, %p179
    %p181 = pneg %p180
    // Predicated region
    $region9: #{pixel_discriminator_forward.2} parent=5 // pred_check
      _
    $region10: #{pixel_discriminator_forward.2} parent=5 // pred_check_branch
      %183 = sbr.rel (%p180) target = $region12
    $region11: #{pixel_discriminator_forward.2} parent=5 // pred_region
      %s184 = ssub.s32 %s13, 1
      // Predicated region
      $region13: #{pixel_discriminator_forward.2} parent=11 // pred_check
        %p185 = pneg %p60
      $region14: #{pixel_discriminator_forward.2} parent=11 // pred_check_branch
        %187 = sbr.rel (%p185) target = $region16
      $region15: #{pixel_discriminator_forward.2} parent=11 // pred_region
        _
      $region16: #{pixel_discriminator_forward.2} parent=11 // pred_fallthru
        _
      // Predicated region
      $region17: #{pixel_discriminator_forward.2} parent=11 // pred_check
        %p188 = pneg %p81
      $region18: #{pixel_discriminator_forward.2} parent=11 // pred_check_branch
        %190 = sbr.rel (%p188) target = $region20
      $region19: #{pixel_discriminator_forward.2} parent=11 // pred_region
        _
      $region20: #{pixel_discriminator_forward.2} parent=11 // pred_fallthru
        _
      // Predicated region
      $region21: #{pixel_discriminator_forward.2} parent=11 // pred_check
        %p191 = pneg %p102
      $region22: #{pixel_discriminator_forward.2} parent=11 // pred_check_branch
        %193 = sbr.rel (%p191) target = $region24
      $region23: #{pixel_discriminator_forward.2} parent=11 // pred_region
        _
      $region24: #{pixel_discriminator_forward.2} parent=11 // pred_fallthru
        _
    $region12: #{pixel_discriminator_forward.2} parent=5 // pred_fallthru
      _
    %p194 = scmp.lt.s32.totalorder %s13, 2
    // Predicated region
    $region25: #{pixel_discriminator_forward.2} parent=5 // pred_check
      %p195 = pneg %p194
    $region26: #{pixel_discriminator_forward.2} parent=5 // pred_check_branch
      %197 = sbr.rel (%p195) target = $region28
    $region27: #{pixel_discriminator_forward.2} parent=5 // pred_region
      // Predicated region
      $region29: #{pixel_discriminator_forward.2} parent=27 // pred_check
        %p198 = pneg %p33
      $region30: #{pixel_discriminator_forward.2} parent=27 // pred_check_branch
        %200 = sbr.rel (%p198) target = $region32
      $region31: #{pixel_discriminator_forward.2} parent=27 // pred_region
        %s201 = smul.u32 32, %s13
        %p202 = scmp.lt.s32.totalorder %s201, 63
        %s203 = scalar_select %p202, %s201, 63
        %s204 = smul.addr %s203, 4
        %s205 = scalar_lea.vmem %s0, %s204
        %s206 = smul.u32 32, %s13
      $region32: #{pixel_discriminator_forward.2} parent=27 // pred_fallthru
        _
    $region28: #{pixel_discriminator_forward.2} parent=5 // pred_fallthru
      _
    %p207 = scmp.le.s32.totalorder 1, %s13
    %p208 = scmp.lt.s32.totalorder %s13, 3
    %p209 = pnand %p207, %p208
    %p210 = pneg %p209
    // Predicated region
    $region33: #{pixel_discriminator_forward.2} parent=5 // pred_check
      _
    $region34: #{pixel_discriminator_forward.2} parent=5 // pred_check_branch
      %212 = sbr.rel (%p209) target = $region36
    $region35: #{pixel_discriminator_forward.2} parent=5 // pred_region
      %s213 = ssub.s32 %s13, 1
      %s214 = smul.u32 32, %s18
      %p215 = scmp.lt.s32.totalorder %s214, 63
      %s216 = scalar_select %p215, %s214, 63
      %s217 = smul.addr %s216, 4
      %s218 = scalar_lea.vmem %s0, %s217
      %p219 = pneg %p39
      %p220 = pneg %p36
      %p221 = pneg %p60
      %p222 = pneg %p57
      %p223 = pneg %p81
      %p224 = pneg %p78
      %p225 = pneg %p102
      %p226 = pneg %p99
      %p227 = pneg %p128
      %p228 = pneg %p125
      %s229 = smul.u32 32, %s18
      %p230 = scmp.lt.s32.totalorder %s229, 63
      %s231 = scalar_select %p230, %s229, 63
      %s232 = smul.addr %s231, 8
      %s233 = scalar_lea.vmem %s4, %s232
      %p234 = pneg %p149
      %p235 = pneg %p146
      %p236 = pneg %p170
      %p237 = pneg %p167
      %s238 = smul.u32 32, %s18
      %p239 = scmp.lt.s32.totalorder %s238, 63
      %s240 = scalar_select %p239, %s238, 63
      %s241 = smul.addr %s240, 4
      %s242 = scalar_lea.vmem %s0, %s241
      %s243 = smul.u32 32, %s18
      %s244 = smul.u32 32, %s18
      %p245 = scmp.lt.s32.totalorder %s244, 63
      %s246 = scalar_select %p245, %s244, 63
      %s247 = smul.addr %s246, 8
      %s248 = scalar_lea.vmem %s4, %s247
      %s249 = smul.u32 32, %s18
      %p251 = scmp.eq.s32.totalorder %s18, 0
      // Predicated region
      $region37: #{pixel_discriminator_forward.2} parent=35 // pred_check
        %p252 = pneg %p251
      $region38: #{pixel_discriminator_forward.2} parent=35 // pred_check_branch
        %254 = sbr.rel (%p252) target = $region40
      $region39: #{pixel_discriminator_forward.2} parent=35 // pred_region
        %255 = vst [vmem:[%s5] sm:$0x1] 0.0
        %256 = vst [vmem:[%s6] sm:$0x1] 0.0
      $region40: #{pixel_discriminator_forward.2} parent=35 // pred_fallthru
        _
      %v257 = vld [vmem:[%s242] sm:$0xf]
      %v258 = vld [vmem:[%s242 + $0x4] sm:$0xf]
      %v259 = vld [vmem:[%s242 + $0x8] sm:$0xf]
      %v260 = vld [vmem:[%s242 + $0xc] sm:$0xf]
      %v261 = vld [vmem:[%s242 + $0x10] sm:$0xf]
      %v262 = vld [vmem:[%s242 + $0x14] sm:$0xf]
      %v263 = vld [vmem:[%s242 + $0x18] sm:$0xf]
      %v264 = vld [vmem:[%s242 + $0x1c] sm:$0xf]
      %v265 = vld [vmem:[%s242 + $0x20] sm:$0xf]
      %v266 = vld [vmem:[%s242 + $0x24] sm:$0xf]
      %v267 = vld [vmem:[%s242 + $0x28] sm:$0xf]
      %v268 = vld [vmem:[%s242 + $0x2c] sm:$0xf]
      %v269 = vld [vmem:[%s242 + $0x30] sm:$0xf]
      %v270 = vld [vmem:[%s242 + $0x34] sm:$0xf]
      %v271 = vld [vmem:[%s242 + $0x38] sm:$0xf]
      %v272 = vld [vmem:[%s242 + $0x3c] sm:$0xf]
      %v273 = vld [vmem:[%s242 + $0x40] sm:$0xf]
      %v274 = vld [vmem:[%s242 + $0x44] sm:$0xf]
      %v275 = vld [vmem:[%s242 + $0x48] sm:$0xf]
      %v276 = vld [vmem:[%s242 + $0x4c] sm:$0xf]
      %v277 = vld [vmem:[%s242 + $0x50] sm:$0xf]
      %v278 = vld [vmem:[%s242 + $0x54] sm:$0xf]
      %v279 = vld [vmem:[%s242 + $0x58] sm:$0xf]
      %v280 = vld [vmem:[%s242 + $0x5c] sm:$0xf]
      %v281 = vld [vmem:[%s242 + $0x60] sm:$0xf]
      %v282 = vld [vmem:[%s242 + $0x64] sm:$0xf]
      %v283 = vld [vmem:[%s242 + $0x68] sm:$0xf]
      %v284 = vld [vmem:[%s242 + $0x6c] sm:$0xf]
      %v285 = vld [vmem:[%s242 + $0x70] sm:$0xf]
      %v286 = vld [vmem:[%s242 + $0x74] sm:$0xf]
      %v287 = vld [vmem:[%s242 + $0x78] sm:$0xf]
      %v288 = vld [vmem:[%s242 + $0x7c] sm:$0xf]
      %v289 = vld [vmem:[%s1] sm:$0xf]
      %v290 = vld [vmem:[%s1 + $0x4] sm:$0xf]
      %v291 = vld [vmem:[%s1 + $0x8] sm:$0xf]
      %v292 = vld [vmem:[%s1 + $0xc] sm:$0xf]
      %v293 = vld [vmem:[%s1 + $0x10] sm:$0xf]
      %v294 = vld [vmem:[%s1 + $0x14] sm:$0xf]
      %v295 = vld [vmem:[%s1 + $0x18] sm:$0xf]
      %v296 = vld [vmem:[%s1 + $0x1c] sm:$0xf]
      %v297 = vld [vmem:[%s1 + $0x20] sm:$0xf]
      %v298 = vld [vmem:[%s1 + $0x24] sm:$0xf]
      %v299 = vld [vmem:[%s1 + $0x28] sm:$0xf]
      %v300 = vld [vmem:[%s1 + $0x2c] sm:$0xf]
      %v301 = vld [vmem:[%s1 + $0x30] sm:$0xf]
      %v302 = vld [vmem:[%s1 + $0x34] sm:$0xf]
      %v303 = vld [vmem:[%s1 + $0x38] sm:$0xf]
      %v304 = vld [vmem:[%s1 + $0x3c] sm:$0xf]
      %v305 = vld [vmem:[%s2] sm:$0x1]
      %v307 = vlaneseq
      %v308 = vshrl.u32 %v307, 7
      %v309 = vsub.s32 0, %v308
      %v310 = vrot.slane %v305, %v309
      %v344 = vunpack.c.l.b16 %v257
      %v345 = vunpack.c.l.b16 %v258
      %v346 = vunpack.c.l.b16 %v259
      %v347 = vunpack.c.l.b16 %v260
      %v348 = vunpack.c.l.b16 %v261
      %v349 = vunpack.c.l.b16 %v262
      %v350 = vunpack.c.l.b16 %v263
      %v351 = vunpack.c.l.b16 %v264
      %v352 = vunpack.c.l.b16 %v265
      %v353 = vunpack.c.l.b16 %v266
      %v354 = vunpack.c.l.b16 %v267
      %v355 = vunpack.c.l.b16 %v268
      %v356 = vunpack.c.l.b16 %v269
      %v357 = vunpack.c.l.b16 %v270
      %v358 = vunpack.c.l.b16 %v271
      %v359 = vunpack.c.l.b16 %v272
      %v360 = vunpack.c.l.b16 %v273
      %v361 = vunpack.c.l.b16 %v274
      %v362 = vunpack.c.l.b16 %v275
      %v363 = vunpack.c.l.b16 %v276
      %v364 = vunpack.c.l.b16 %v277
      %v365 = vunpack.c.l.b16 %v278
      %v366 = vunpack.c.l.b16 %v279
      %v367 = vunpack.c.l.b16 %v280
      %v368 = vunpack.c.l.b16 %v281
      %v369 = vunpack.c.l.b16 %v282
      %v370 = vunpack.c.l.b16 %v283
      %v371 = vunpack.c.l.b16 %v284
      %v372 = vunpack.c.l.b16 %v285
      %v373 = vunpack.c.l.b16 %v286
      %v374 = vunpack.c.l.b16 %v287
      %v375 = vunpack.c.l.b16 %v288
      %v376 = vpack.c.b16 %v345, %v344
      %v377 = vpack.c.b16 %v347, %v346
      %v378 = vpack.c.b16 %v349, %v348
      %v379 = vpack.c.b16 %v351, %v350
      %v380 = vpack.c.b16 %v353, %v352
      %v381 = vpack.c.b16 %v355, %v354
      %v382 = vpack.c.b16 %v357, %v356
      %v383 = vpack.c.b16 %v359, %v358
      %v384 = vpack.c.b16 %v361, %v360
      %v385 = vpack.c.b16 %v363, %v362
      %v386 = vpack.c.b16 %v365, %v364
      %v387 = vpack.c.b16 %v367, %v366
      %v388 = vpack.c.b16 %v369, %v368
      %v389 = vpack.c.b16 %v371, %v370
      %v390 = vpack.c.b16 %v373, %v372
      %v391 = vpack.c.b16 %v375, %v374
      %v424 = vunpack.c.l.b16 %v289
      %v425 = vunpack.c.l.b16 %v290
      %v426 = vunpack.c.l.b16 %v291
      %v427 = vunpack.c.l.b16 %v292
      %v428 = vunpack.c.l.b16 %v293
      %v429 = vunpack.c.l.b16 %v294
      %v430 = vunpack.c.l.b16 %v295
      %v431 = vunpack.c.l.b16 %v296
      %v432 = vunpack.c.l.b16 %v297
      %v433 = vunpack.c.l.b16 %v298
      %v434 = vunpack.c.l.b16 %v299
      %v435 = vunpack.c.l.b16 %v300
      %v436 = vunpack.c.l.b16 %v301
      %v437 = vunpack.c.l.b16 %v302
      %v438 = vunpack.c.l.b16 %v303
      %v439 = vunpack.c.l.b16 %v304
      %v440 = vpack.c.b16 %v425, %v424
      %v441 = vpack.c.b16 %v427, %v426
      %v442 = vpack.c.b16 %v429, %v428
      %v443 = vpack.c.b16 %v431, %v430
      %v444 = vpack.c.b16 %v433, %v432
      %v445 = vpack.c.b16 %v435, %v434
      %v446 = vpack.c.b16 %v437, %v436
      %v447 = vpack.c.b16 %v439, %v438
      %456 = vmatprep.subr.bf16.mxu0 0
      %457 = vmatpush1.bf16.msra.mxu0 %v447
      %458 = vmatprep.subr.bf16.mxu0 0
      %459 = vmatpush1.bf16.msra.mxu0 %v446
      %460 = vmatprep.subr.bf16.mxu0 0
      %461 = vmatpush1.bf16.msra.mxu0 %v445
      %462 = vmatprep.subr.bf16.mxu0 0
      %463 = vmatpush1.bf16.msra.mxu0 %v444
      %464 = vmatprep.subr.bf16.mxu0 0
      %465 = vmatpush1.bf16.msra.mxu0 %v443
      %466 = vmatprep.subr.bf16.mxu0 0
      %467 = vmatpush1.bf16.msra.mxu0 %v442
      %468 = vmatprep.subr.bf16.mxu0 0
      %469 = vmatpush1.bf16.msra.mxu0 %v441
      %470 = vmatprep.subr.bf16.mxu0 0
      %471 = vmatpush1.bf16.msra.mxu0 %v440
      %472 = vmatprep.subr.bf16.mxu0 0
      %473 = vmatpush2.bf16.msra.mxu0 0
      %474 = vmatprep.subr.bf16.mxu0 0
      %475 = vmatpush2.bf16.msra.mxu0 0
      %476 = vmatprep.subr.bf16.mxu0 0
      %477 = vmatpush2.bf16.msra.mxu0 0
      %478 = vmatprep.subr.bf16.mxu0 0
      %479 = vmatpush2.bf16.msra.mxu0 0
      %480 = vmatprep.subr.bf16.mxu0 0
      %481 = vmatpush2.bf16.msra.mxu0 0
      %482 = vmatprep.subr.bf16.mxu0 0
      %483 = vmatpush2.bf16.msra.mxu0 0
      %484 = vmatprep.subr.bf16.mxu0 0
      %485 = vmatpush2.bf16.msra.mxu0 0
      %486 = vmatprep.subr.bf16.mxu0 0
      %487 = vmatpush2.bf16.msra.mxu0 0
      %488 = vmatprep.mubr.bf16.mxu0 0
      %489 = vmatmul.mubr.bf16.gmra.mxu0 %v376
      %v490 = vpop.f32.mrf.mxu0
      %v491 = vadd.f32 %v310, %v490
      %v492 = vpop.f32.mrf.mxu0
      %v493 = vpop.f32.mrf.mxu0
      %v494 = vadd.f32 %v310, %v493
      %v495 = vpop.f32.mrf.mxu0
      %496 = vmatprep.mubr.bf16.mxu0 0
      %497 = vmatmul.mubr.bf16.gmra.mxu0 %v377
      %v498 = vpop.f32.mrf.mxu0
      %v499 = vadd.f32 %v310, %v498
      %v500 = vpop.f32.mrf.mxu0
      %v501 = vpop.f32.mrf.mxu0
      %v502 = vadd.f32 %v310, %v501
      %v503 = vpop.f32.mrf.mxu0
      %504 = vmatprep.mubr.bf16.mxu0 0
      %505 = vmatmul.mubr.bf16.gmra.mxu0 %v378
      %v506 = vpop.f32.mrf.mxu0
      %v507 = vadd.f32 %v310, %v506
      %v508 = vpop.f32.mrf.mxu0
      %v509 = vpop.f32.mrf.mxu0
      %v510 = vadd.f32 %v310, %v509
      %v511 = vpop.f32.mrf.mxu0
      %512 = vmatprep.mubr.bf16.mxu0 0
      %513 = vmatmul.mubr.bf16.gmra.mxu0 %v379
      %v514 = vpop.f32.mrf.mxu0
      %v515 = vadd.f32 %v310, %v514
      %v516 = vpop.f32.mrf.mxu0
      %v517 = vpop.f32.mrf.mxu0
      %v518 = vadd.f32 %v310, %v517
      %v519 = vpop.f32.mrf.mxu0
      %520 = vmatprep.mubr.bf16.mxu0 0
      %521 = vmatmul.mubr.bf16.gmra.mxu0 %v380
      %v522 = vpop.f32.mrf.mxu0
      %v523 = vadd.f32 %v310, %v522
      %v524 = vpop.f32.mrf.mxu0
      %v525 = vpop.f32.mrf.mxu0
      %v526 = vadd.f32 %v310, %v525
      %v527 = vpop.f32.mrf.mxu0
      %528 = vmatprep.mubr.bf16.mxu0 0
      %529 = vmatmul.mubr.bf16.gmra.mxu0 %v381
      %v530 = vpop.f32.mrf.mxu0
      %v531 = vadd.f32 %v310, %v530
      %v532 = vpop.f32.mrf.mxu0
      %v533 = vpop.f32.mrf.mxu0
      %v534 = vadd.f32 %v310, %v533
      %v535 = vpop.f32.mrf.mxu0
      %536 = vmatprep.mubr.bf16.mxu0 0
      %537 = vmatmul.mubr.bf16.gmra.mxu0 %v382
      %v538 = vpop.f32.mrf.mxu0
      %v539 = vadd.f32 %v310, %v538
      %v540 = vpop.f32.mrf.mxu0
      %v541 = vpop.f32.mrf.mxu0
      %v542 = vadd.f32 %v310, %v541
      %v543 = vpop.f32.mrf.mxu0
      %544 = vmatprep.mubr.bf16.mxu0 0
      %545 = vmatmul.mubr.bf16.gmra.mxu0 %v383
      %v546 = vpop.f32.mrf.mxu0
      %v547 = vadd.f32 %v310, %v546
      %v548 = vpop.f32.mrf.mxu0
      %v549 = vpop.f32.mrf.mxu0
      %v550 = vadd.f32 %v310, %v549
      %v551 = vpop.f32.mrf.mxu0
      %552 = vmatprep.mubr.bf16.mxu0 0
      %553 = vmatmul.mubr.bf16.gmra.mxu0 %v384
      %v554 = vpop.f32.mrf.mxu0
      %v555 = vadd.f32 %v310, %v554
      %v556 = vpop.f32.mrf.mxu0
      %v557 = vpop.f32.mrf.mxu0
      %v558 = vadd.f32 %v310, %v557
      %v559 = vpop.f32.mrf.mxu0
      %560 = vmatprep.mubr.bf16.mxu0 0
      %561 = vmatmul.mubr.bf16.gmra.mxu0 %v385
      %v562 = vpop.f32.mrf.mxu0
      %v563 = vadd.f32 %v310, %v562
      %v564 = vpop.f32.mrf.mxu0
      %v565 = vpop.f32.mrf.mxu0
      %v566 = vadd.f32 %v310, %v565
      %v567 = vpop.f32.mrf.mxu0
      %568 = vmatprep.mubr.bf16.mxu0 0
      %569 = vmatmul.mubr.bf16.gmra.mxu0 %v386
      %v570 = vpop.f32.mrf.mxu0
      %v571 = vadd.f32 %v310, %v570
      %v572 = vpop.f32.mrf.mxu0
      %v573 = vpop.f32.mrf.mxu0
      %v574 = vadd.f32 %v310, %v573
      %v575 = vpop.f32.mrf.mxu0
      %576 = vmatprep.mubr.bf16.mxu0 0
      %577 = vmatmul.mubr.bf16.gmra.mxu0 %v387
      %v578 = vpop.f32.mrf.mxu0
      %v579 = vadd.f32 %v310, %v578
      %v580 = vpop.f32.mrf.mxu0
      %v581 = vpop.f32.mrf.mxu0
      %v582 = vadd.f32 %v310, %v581
      %v583 = vpop.f32.mrf.mxu0
      %584 = vmatprep.mubr.bf16.mxu0 0
      %585 = vmatmul.mubr.bf16.gmra.mxu0 %v388
      %v586 = vpop.f32.mrf.mxu0
      %v587 = vadd.f32 %v310, %v586
      %v588 = vpop.f32.mrf.mxu0
      %v589 = vpop.f32.mrf.mxu0
      %v590 = vadd.f32 %v310, %v589
      %v591 = vpop.f32.mrf.mxu0
      %592 = vmatprep.mubr.bf16.mxu0 0
      %593 = vmatmul.mubr.bf16.gmra.mxu0 %v389
      %v594 = vpop.f32.mrf.mxu0
      %v595 = vadd.f32 %v310, %v594
      %v596 = vpop.f32.mrf.mxu0
      %v597 = vpop.f32.mrf.mxu0
      %v598 = vadd.f32 %v310, %v597
      %v599 = vpop.f32.mrf.mxu0
      %600 = vmatprep.mubr.bf16.mxu0 0
      %601 = vmatmul.mubr.bf16.gmra.mxu0 %v390
      %v602 = vpop.f32.mrf.mxu0
      %v603 = vadd.f32 %v310, %v602
      %v604 = vpop.f32.mrf.mxu0
      %v605 = vpop.f32.mrf.mxu0
      %v606 = vadd.f32 %v310, %v605
      %v607 = vpop.f32.mrf.mxu0
      %608 = vmatprep.mubr.bf16.mxu0 0
      %609 = vmatmul.mubr.bf16.gmra.mxu0 %v391
      %v610 = vpop.f32.mrf.mxu0
      %v611 = vadd.f32 %v310, %v610
      %v612 = vpop.f32.mrf.mxu0
      %v613 = vpop.f32.mrf.mxu0
      %v614 = vadd.f32 %v310, %v613
      %v615 = vpop.f32.mrf.mxu0
      %616 = vdwg.mxu0
      %v617 = vmul.f32 %v491, 0.2
      %v618 = vmul.f32 %v494, 0.2
      %v619 = vmul.f32 %v499, 0.2
      %v620 = vmul.f32 %v502, 0.2
      %v621 = vmul.f32 %v507, 0.2
      %v622 = vmul.f32 %v510, 0.2
      %v623 = vmul.f32 %v515, 0.2
      %v624 = vmul.f32 %v518, 0.2
      %v625 = vmul.f32 %v523, 0.2
      %v626 = vmul.f32 %v526, 0.2
      %v627 = vmul.f32 %v531, 0.2
      %v628 = vmul.f32 %v534, 0.2
      %v629 = vmul.f32 %v539, 0.2
      %v630 = vmul.f32 %v542, 0.2
      %v631 = vmul.f32 %v547, 0.2
      %v632 = vmul.f32 %v550, 0.2
      %v633 = vmul.f32 %v555, 0.2
      %v634 = vmul.f32 %v558, 0.2
      %v635 = vmul.f32 %v563, 0.2
      %v636 = vmul.f32 %v566, 0.2
      %v637 = vmul.f32 %v571, 0.2
      %v638 = vmul.f32 %v574, 0.2
      %v639 = vmul.f32 %v579, 0.2
      %v640 = vmul.f32 %v582, 0.2
      %v641 = vmul.f32 %v587, 0.2
      %v642 = vmul.f32 %v590, 0.2
      %v643 = vmul.f32 %v595, 0.2
      %v644 = vmul.f32 %v598, 0.2
      %v645 = vmul.f32 %v603, 0.2
      %v646 = vmul.f32 %v606, 0.2
      %v647 = vmul.f32 %v611, 0.2
      %v648 = vmul.f32 %v614, 0.2
      %v649 = vmax.f32 %v491, %v617
      %v650 = vmax.f32 %v494, %v618
      %v651 = vmax.f32 %v499, %v619
      %v652 = vmax.f32 %v502, %v620
      %v653 = vmax.f32 %v507, %v621
      %v654 = vmax.f32 %v510, %v622
      %v655 = vmax.f32 %v515, %v623
      %v656 = vmax.f32 %v518, %v624
      %v657 = vmax.f32 %v523, %v625
      %v658 = vmax.f32 %v526, %v626
      %v659 = vmax.f32 %v531, %v627
      %v660 = vmax.f32 %v534, %v628
      %v661 = vmax.f32 %v539, %v629
      %v662 = vmax.f32 %v542, %v630
      %v663 = vmax.f32 %v547, %v631
      %v664 = vmax.f32 %v550, %v632
      %v665 = vmax.f32 %v555, %v633
      %v666 = vmax.f32 %v558, %v634
      %v667 = vmax.f32 %v563, %v635
      %v668 = vmax.f32 %v566, %v636
      %v669 = vmax.f32 %v571, %v637
      %v670 = vmax.f32 %v574, %v638
      %v671 = vmax.f32 %v579, %v639
      %v672 = vmax.f32 %v582, %v640
      %v673 = vmax.f32 %v587, %v641
      %v674 = vmax.f32 %v590, %v642
      %v675 = vmax.f32 %v595, %v643
      %v676 = vmax.f32 %v598, %v644
      %v677 = vmax.f32 %v603, %v645
      %v678 = vmax.f32 %v606, %v646
      %v679 = vmax.f32 %v611, %v647
      %v680 = vmax.f32 %v614, %v648
      %v681 = vpack.c.bf16 %v650, %v649
      %v682 = vpack.c.bf16 %v652, %v651
      %v683 = vpack.c.bf16 %v654, %v653
      %v684 = vpack.c.bf16 %v656, %v655
      %v685 = vpack.c.bf16 %v658, %v657
      %v686 = vpack.c.bf16 %v660, %v659
      %v687 = vpack.c.bf16 %v662, %v661
      %v688 = vpack.c.bf16 %v664, %v663
      %v689 = vpack.c.bf16 %v666, %v665
      %v690 = vpack.c.bf16 %v668, %v667
      %v691 = vpack.c.bf16 %v670, %v669
      %v692 = vpack.c.bf16 %v672, %v671
      %v693 = vpack.c.bf16 %v674, %v673
      %v694 = vpack.c.bf16 %v676, %v675
      %v695 = vpack.c.bf16 %v678, %v677
      %v696 = vpack.c.bf16 %v680, %v679
      %v697 = vld [vmem:[%s3] sm:$0xf]
      %v698 = vld [vmem:[%s3 + $0x4] sm:$0xf]
      %v699 = vld [vmem:[%s3 + $0x8] sm:$0xf]
      %v700 = vld [vmem:[%s3 + $0xc] sm:$0xf]
      %v701 = vld [vmem:[%s3 + $0x10] sm:$0xf]
      %v702 = vld [vmem:[%s3 + $0x14] sm:$0xf]
      %v703 = vld [vmem:[%s3 + $0x18] sm:$0xf]
      %v704 = vld [vmem:[%s3 + $0x1c] sm:$0xf]
      %v705 = vld [vmem:[%s3 + $0x20] sm:$0xf]
      %v706 = vld [vmem:[%s3 + $0x24] sm:$0xf]
      %v707 = vld [vmem:[%s3 + $0x28] sm:$0xf]
      %v708 = vld [vmem:[%s3 + $0x2c] sm:$0xf]
      %v709 = vld [vmem:[%s3 + $0x30] sm:$0xf]
      %v710 = vld [vmem:[%s3 + $0x34] sm:$0xf]
      %v711 = vld [vmem:[%s3 + $0x38] sm:$0xf]
      %v712 = vld [vmem:[%s3 + $0x3c] sm:$0xf]
      %v729 = vunpack.c.l.b16 %v697
      %v730 = vunpack.c.l.b16 %v698
      %v731 = vunpack.c.l.b16 %v699
      %v732 = vunpack.c.l.b16 %v700
      %v733 = vunpack.c.l.b16 %v701
      %v734 = vunpack.c.l.b16 %v702
      %v735 = vunpack.c.l.b16 %v703
      %v736 = vunpack.c.l.b16 %v704
      %v737 = vunpack.c.l.b16 %v705
      %v738 = vunpack.c.l.b16 %v706
      %v739 = vunpack.c.l.b16 %v707
      %v740 = vunpack.c.l.b16 %v708
      %v741 = vunpack.c.l.b16 %v709
      %v742 = vunpack.c.l.b16 %v710
      %v743 = vunpack.c.l.b16 %v711
      %v744 = vunpack.c.l.b16 %v712
      %v745 = vpack.c.b16 %v730, %v729
      %v746 = vpack.c.b16 %v732, %v731
      %v747 = vpack.c.b16 %v734, %v733
      %v748 = vpack.c.b16 %v736, %v735
      %v749 = vpack.c.b16 %v738, %v737
      %v750 = vpack.c.b16 %v740, %v739
      %v751 = vpack.c.b16 %v742, %v741
      %v752 = vpack.c.b16 %v744, %v743
      %761 = vmatprep.subr.bf16.mxu0 0
      %762 = vmatpush1.bf16.msra.mxu0 %v752
      %763 = vmatprep.subr.bf16.mxu0 0
      %764 = vmatpush1.bf16.msra.mxu0 %v751
      %765 = vmatprep.subr.bf16.mxu0 0
      %766 = vmatpush1.bf16.msra.mxu0 %v750
      %767 = vmatprep.subr.bf16.mxu0 0
      %768 = vmatpush1.bf16.msra.mxu0 %v749
      %769 = vmatprep.subr.bf16.mxu0 0
      %770 = vmatpush1.bf16.msra.mxu0 %v748
      %771 = vmatprep.subr.bf16.mxu0 0
      %772 = vmatpush1.bf16.msra.mxu0 %v747
      %773 = vmatprep.subr.bf16.mxu0 0
      %774 = vmatpush1.bf16.msra.mxu0 %v746
      %775 = vmatprep.subr.bf16.mxu0 0
      %776 = vmatpush1.bf16.msra.mxu0 %v745
      %777 = vmatprep.subr.bf16.mxu0 0
      %778 = vmatpush2.bf16.msra.mxu0 0
      %779 = vmatprep.subr.bf16.mxu0 0
      %780 = vmatpush2.bf16.msra.mxu0 0
      %781 = vmatprep.subr.bf16.mxu0 0
      %782 = vmatpush2.bf16.msra.mxu0 0
      %783 = vmatprep.subr.bf16.mxu0 0
      %784 = vmatpush2.bf16.msra.mxu0 0
      %785 = vmatprep.subr.bf16.mxu0 0
      %786 = vmatpush2.bf16.msra.mxu0 0
      %787 = vmatprep.subr.bf16.mxu0 0
      %788 = vmatpush2.bf16.msra.mxu0 0
      %789 = vmatprep.subr.bf16.mxu0 0
      %790 = vmatpush2.bf16.msra.mxu0 0
      %791 = vmatprep.subr.bf16.mxu0 0
      %792 = vmatpush2.bf16.msra.mxu0 0
      %793 = vmatprep.mubr.bf16.mxu0 0
      %794 = vmatmul.mubr.bf16.gmra.mxu0 %v681
      %v795 = vpop.f32.mrf.mxu0
      %v796 = vadd.f32 0.0, %v795
      %v797 = vpop.f32.mrf.mxu0
      %v798 = vpop.f32.mrf.mxu0
      %v799 = vadd.f32 0.0, %v798
      %v800 = vpop.f32.mrf.mxu0
      %801 = vmatprep.mubr.bf16.mxu0 0
      %802 = vmatmul.mubr.bf16.gmra.mxu0 %v682
      %v803 = vpop.f32.mrf.mxu0
      %v804 = vadd.f32 0.0, %v803
      %v805 = vpop.f32.mrf.mxu0
      %v806 = vpop.f32.mrf.mxu0
      %v807 = vadd.f32 0.0, %v806
      %v808 = vpop.f32.mrf.mxu0
      %809 = vmatprep.mubr.bf16.mxu0 0
      %810 = vmatmul.mubr.bf16.gmra.mxu0 %v683
      %v811 = vpop.f32.mrf.mxu0
      %v812 = vadd.f32 0.0, %v811
      %v813 = vpop.f32.mrf.mxu0
      %v814 = vpop.f32.mrf.mxu0
      %v815 = vadd.f32 0.0, %v814
      %v816 = vpop.f32.mrf.mxu0
      %817 = vmatprep.mubr.bf16.mxu0 0
      %818 = vmatmul.mubr.bf16.gmra.mxu0 %v684
      %v819 = vpop.f32.mrf.mxu0
      %v820 = vadd.f32 0.0, %v819
      %v821 = vpop.f32.mrf.mxu0
      %v822 = vpop.f32.mrf.mxu0
      %v823 = vadd.f32 0.0, %v822
      %v824 = vpop.f32.mrf.mxu0
      %825 = vmatprep.mubr.bf16.mxu0 0
      %826 = vmatmul.mubr.bf16.gmra.mxu0 %v685
      %v827 = vpop.f32.mrf.mxu0
      %v828 = vadd.f32 0.0, %v827
      %v829 = vpop.f32.mrf.mxu0
      %v830 = vpop.f32.mrf.mxu0
      %v831 = vadd.f32 0.0, %v830
      %v832 = vpop.f32.mrf.mxu0
      %833 = vmatprep.mubr.bf16.mxu0 0
      %834 = vmatmul.mubr.bf16.gmra.mxu0 %v686
      %v835 = vpop.f32.mrf.mxu0
      %v836 = vadd.f32 0.0, %v835
      %v837 = vpop.f32.mrf.mxu0
      %v838 = vpop.f32.mrf.mxu0
      %v839 = vadd.f32 0.0, %v838
      %v840 = vpop.f32.mrf.mxu0
      %841 = vmatprep.mubr.bf16.mxu0 0
      %842 = vmatmul.mubr.bf16.gmra.mxu0 %v687
      %v843 = vpop.f32.mrf.mxu0
      %v844 = vadd.f32 0.0, %v843
      %v845 = vpop.f32.mrf.mxu0
      %v846 = vpop.f32.mrf.mxu0
      %v847 = vadd.f32 0.0, %v846
      %v848 = vpop.f32.mrf.mxu0
      %849 = vmatprep.mubr.bf16.mxu0 0
      %850 = vmatmul.mubr.bf16.gmra.mxu0 %v688
      %v851 = vpop.f32.mrf.mxu0
      %v852 = vadd.f32 0.0, %v851
      %v853 = vpop.f32.mrf.mxu0
      %v854 = vpop.f32.mrf.mxu0
      %v855 = vadd.f32 0.0, %v854
      %v856 = vpop.f32.mrf.mxu0
      %857 = vmatprep.mubr.bf16.mxu0 0
      %858 = vmatmul.mubr.bf16.gmra.mxu0 %v689
      %v859 = vpop.f32.mrf.mxu0
      %v860 = vadd.f32 0.0, %v859
      %v861 = vpop.f32.mrf.mxu0
      %v862 = vpop.f32.mrf.mxu0
      %v863 = vadd.f32 0.0, %v862
      %v864 = vpop.f32.mrf.mxu0
      %865 = vmatprep.mubr.bf16.mxu0 0
      %866 = vmatmul.mubr.bf16.gmra.mxu0 %v690
      %v867 = vpop.f32.mrf.mxu0
      %v868 = vadd.f32 0.0, %v867
      %v869 = vpop.f32.mrf.mxu0
      %v870 = vpop.f32.mrf.mxu0
      %v871 = vadd.f32 0.0, %v870
      %v872 = vpop.f32.mrf.mxu0
      %873 = vmatprep.mubr.bf16.mxu0 0
      %874 = vmatmul.mubr.bf16.gmra.mxu0 %v691
      %v875 = vpop.f32.mrf.mxu0
      %v876 = vadd.f32 0.0, %v875
      %v877 = vpop.f32.mrf.mxu0
      %v878 = vpop.f32.mrf.mxu0
      %v879 = vadd.f32 0.0, %v878
      %v880 = vpop.f32.mrf.mxu0
      %881 = vmatprep.mubr.bf16.mxu0 0
      %882 = vmatmul.mubr.bf16.gmra.mxu0 %v692
      %v883 = vpop.f32.mrf.mxu0
      %v884 = vadd.f32 0.0, %v883
      %v885 = vpop.f32.mrf.mxu0
      %v886 = vpop.f32.mrf.mxu0
      %v887 = vadd.f32 0.0, %v886
      %v888 = vpop.f32.mrf.mxu0
      %889 = vmatprep.mubr.bf16.mxu0 0
      %890 = vmatmul.mubr.bf16.gmra.mxu0 %v693
      %v891 = vpop.f32.mrf.mxu0
      %v892 = vadd.f32 0.0, %v891
      %v893 = vpop.f32.mrf.mxu0
      %v894 = vpop.f32.mrf.mxu0
      %v895 = vadd.f32 0.0, %v894
      %v896 = vpop.f32.mrf.mxu0
      %897 = vmatprep.mubr.bf16.mxu0 0
      %898 = vmatmul.mubr.bf16.gmra.mxu0 %v694
      %v899 = vpop.f32.mrf.mxu0
      %v900 = vadd.f32 0.0, %v899
      %v901 = vpop.f32.mrf.mxu0
      %v902 = vpop.f32.mrf.mxu0
      %v903 = vadd.f32 0.0, %v902
      %v904 = vpop.f32.mrf.mxu0
      %905 = vmatprep.mubr.bf16.mxu0 0
      %906 = vmatmul.mubr.bf16.gmra.mxu0 %v695
      %v907 = vpop.f32.mrf.mxu0
      %v908 = vadd.f32 0.0, %v907
      %v909 = vpop.f32.mrf.mxu0
      %v910 = vpop.f32.mrf.mxu0
      %v911 = vadd.f32 0.0, %v910
      %v912 = vpop.f32.mrf.mxu0
      %913 = vmatprep.mubr.bf16.mxu0 0
      %914 = vmatmul.mubr.bf16.gmra.mxu0 %v696
      %v915 = vpop.f32.mrf.mxu0
      %v916 = vadd.f32 0.0, %v915
      %v917 = vpop.f32.mrf.mxu0
      %v918 = vpop.f32.mrf.mxu0
      %v919 = vadd.f32 0.0, %v918
      %v920 = vpop.f32.mrf.mxu0
      %921 = vdwg.mxu0
      %922 = vst [vmem:[%s248] sm:$0xff] %v796
      %923 = vst [vmem:[%s248 + $0x8] sm:$0xff] %v799
      %924 = vst [vmem:[%s248 + $0x10] sm:$0xff] %v804
      %925 = vst [vmem:[%s248 + $0x18] sm:$0xff] %v807
      %926 = vst [vmem:[%s248 + $0x20] sm:$0xff] %v812
      %927 = vst [vmem:[%s248 + $0x28] sm:$0xff] %v815
      %928 = vst [vmem:[%s248 + $0x30] sm:$0xff] %v820
      %929 = vst [vmem:[%s248 + $0x38] sm:$0xff] %v823
      %930 = vst [vmem:[%s248 + $0x40] sm:$0xff] %v828
      %931 = vst [vmem:[%s248 + $0x48] sm:$0xff] %v831
      %932 = vst [vmem:[%s248 + $0x50] sm:$0xff] %v836
      %933 = vst [vmem:[%s248 + $0x58] sm:$0xff] %v839
      %934 = vst [vmem:[%s248 + $0x60] sm:$0xff] %v844
      %935 = vst [vmem:[%s248 + $0x68] sm:$0xff] %v847
      %936 = vst [vmem:[%s248 + $0x70] sm:$0xff] %v852
      %937 = vst [vmem:[%s248 + $0x78] sm:$0xff] %v855
      %938 = vst [vmem:[%s248 + $0x80] sm:$0xff] %v860
      %939 = vst [vmem:[%s248 + $0x88] sm:$0xff] %v863
      %940 = vst [vmem:[%s248 + $0x90] sm:$0xff] %v868
      %941 = vst [vmem:[%s248 + $0x98] sm:$0xff] %v871
      %942 = vst [vmem:[%s248 + $0xa0] sm:$0xff] %v876
      %943 = vst [vmem:[%s248 + $0xa8] sm:$0xff] %v879
      %944 = vst [vmem:[%s248 + $0xb0] sm:$0xff] %v884
      %945 = vst [vmem:[%s248 + $0xb8] sm:$0xff] %v887
      %946 = vst [vmem:[%s248 + $0xc0] sm:$0xff] %v892
      %947 = vst [vmem:[%s248 + $0xc8] sm:$0xff] %v895
      %948 = vst [vmem:[%s248 + $0xd0] sm:$0xff] %v900
      %949 = vst [vmem:[%s248 + $0xd8] sm:$0xff] %v903
      %950 = vst [vmem:[%s248 + $0xe0] sm:$0xff] %v908
      %951 = vst [vmem:[%s248 + $0xe8] sm:$0xff] %v911
      %952 = vst [vmem:[%s248 + $0xf0] sm:$0xff] %v916
      %953 = vst [vmem:[%s248 + $0xf8] sm:$0xff] %v919
      %v954 = vlaneseq
      %v955 = vshrl.u32 %v954, 7
      %v956 = vadd.s32 %v955, 8
      %v957 = vadd.s32 %v955, 16
      %v958 = vadd.s32 %v955, 24
      %v959 = vadd.s32 %v955, 32
      %v960 = vadd.s32 %v955, 40
      %v961 = vadd.s32 %v955, 48
      %v962 = vadd.s32 %v955, 56
      %v963 = vadd.s32 %v955, 64
      %v964 = vadd.s32 %v955, 72
      %v965 = vadd.s32 %v955, 80
      %v966 = vadd.s32 %v955, 88
      %v967 = vadd.s32 %v955, 96
      %v968 = vadd.s32 %v955, 104
      %v969 = vadd.s32 %v955, 112
      %v970 = vadd.s32 %v955, 120
      %v971 = vadd.s32 %v955, 128
      %v972 = vadd.s32 %v955, 136
      %v973 = vadd.s32 %v955, 144
      %v974 = vadd.s32 %v955, 152
      %v975 = vadd.s32 %v955, 160
      %v976 = vadd.s32 %v955, 168
      %v977 = vadd.s32 %v955, 176
      %v978 = vadd.s32 %v955, 184
      %v979 = vadd.s32 %v955, 192
      %v980 = vadd.s32 %v955, 200
      %v981 = vadd.s32 %v955, 208
      %v982 = vadd.s32 %v955, 216
      %v983 = vadd.s32 %v955, 224
      %v984 = vadd.s32 %v955, 232
      %v985 = vadd.s32 %v955, 240
      %v986 = vadd.s32 %v955, 248
      %s987 = smul.u32 %s18, 256
      %v988 = vstv %s987
      %v989 = vadd.s32 %v955, %v988
      %v990 = vadd.s32 %v956, %v988
      %v991 = vadd.s32 %v957, %v988
      %v992 = vadd.s32 %v958, %v988
      %v993 = vadd.s32 %v959, %v988
      %v994 = vadd.s32 %v960, %v988
      %v995 = vadd.s32 %v961, %v988
      %v996 = vadd.s32 %v962, %v988
      %v997 = vadd.s32 %v963, %v988
      %v998 = vadd.s32 %v964, %v988
      %v999 = vadd.s32 %v965, %v988
      %v1000 = vadd.s32 %v966, %v988
      %v1001 = vadd.s32 %v967, %v988
      %v1002 = vadd.s32 %v968, %v988
      %v1003 = vadd.s32 %v969, %v988
      %v1004 = vadd.s32 %v970, %v988
      %v1005 = vadd.s32 %v971, %v988
      %v1006 = vadd.s32 %v972, %v988
      %v1007 = vadd.s32 %v973, %v988
      %v1008 = vadd.s32 %v974, %v988
      %v1009 = vadd.s32 %v975, %v988
      %v1010 = vadd.s32 %v976, %v988
      %v1011 = vadd.s32 %v977, %v988
      %v1012 = vadd.s32 %v978, %v988
      %v1013 = vadd.s32 %v979, %v988
      %v1014 = vadd.s32 %v980, %v988
      %v1015 = vadd.s32 %v981, %v988
      %v1016 = vadd.s32 %v982, %v988
      %v1017 = vadd.s32 %v983, %v988
      %v1018 = vadd.s32 %v984, %v988
      %v1019 = vadd.s32 %v985, %v988
      %v1020 = vadd.s32 %v986, %v988
      %vm1021 = vcmp.lt.s32.totalorder %v989, 512
      %vm1022 = vcmp.lt.s32.totalorder %v990, 512
      %vm1023 = vcmp.lt.s32.totalorder %v991, 512
      %vm1024 = vcmp.lt.s32.totalorder %v992, 512
      %vm1025 = vcmp.lt.s32.totalorder %v993, 512
      %vm1026 = vcmp.lt.s32.totalorder %v994, 512
      %vm1027 = vcmp.lt.s32.totalorder %v995, 512
      %vm1028 = vcmp.lt.s32.totalorder %v996, 512
      %vm1029 = vcmp.lt.s32.totalorder %v997, 512
      %vm1030 = vcmp.lt.s32.totalorder %v998, 512
      %vm1031 = vcmp.lt.s32.totalorder %v999, 512
      %vm1032 = vcmp.lt.s32.totalorder %v1000, 512
      %vm1033 = vcmp.lt.s32.totalorder %v1001, 512
      %vm1034 = vcmp.lt.s32.totalorder %v1002, 512
      %vm1035 = vcmp.lt.s32.totalorder %v1003, 512
      %vm1036 = vcmp.lt.s32.totalorder %v1004, 512
      %vm1037 = vcmp.lt.s32.totalorder %v1005, 512
      %vm1038 = vcmp.lt.s32.totalorder %v1006, 512
      %vm1039 = vcmp.lt.s32.totalorder %v1007, 512
      %vm1040 = vcmp.lt.s32.totalorder %v1008, 512
      %vm1041 = vcmp.lt.s32.totalorder %v1009, 512
      %vm1042 = vcmp.lt.s32.totalorder %v1010, 512
      %vm1043 = vcmp.lt.s32.totalorder %v1011, 512
      %vm1044 = vcmp.lt.s32.totalorder %v1012, 512
      %vm1045 = vcmp.lt.s32.totalorder %v1013, 512
      %vm1046 = vcmp.lt.s32.totalorder %v1014, 512
      %vm1047 = vcmp.lt.s32.totalorder %v1015, 512
      %vm1048 = vcmp.lt.s32.totalorder %v1016, 512
      %vm1049 = vcmp.lt.s32.totalorder %v1017, 512
      %vm1050 = vcmp.lt.s32.totalorder %v1018, 512
      %vm1051 = vcmp.lt.s32.totalorder %v1019, 512
      %vm1052 = vcmp.lt.s32.totalorder %v1020, 512
      %v1053 = vsel %vm1021, 1, 0
      %v1054 = vsel %vm1022, 1, 0
      %v1055 = vsel %vm1023, 1, 0
      %v1056 = vsel %vm1024, 1, 0
      %v1057 = vsel %vm1025, 1, 0
      %v1058 = vsel %vm1026, 1, 0
      %v1059 = vsel %vm1027, 1, 0
      %v1060 = vsel %vm1028, 1, 0
      %v1061 = vsel %vm1029, 1, 0
      %v1062 = vsel %vm1030, 1, 0
      %v1063 = vsel %vm1031, 1, 0
      %v1064 = vsel %vm1032, 1, 0
      %v1065 = vsel %vm1033, 1, 0
      %v1066 = vsel %vm1034, 1, 0
      %v1067 = vsel %vm1035, 1, 0
      %v1068 = vsel %vm1036, 1, 0
      %v1069 = vsel %vm1037, 1, 0
      %v1070 = vsel %vm1038, 1, 0
      %v1071 = vsel %vm1039, 1, 0
      %v1072 = vsel %vm1040, 1, 0
      %v1073 = vsel %vm1041, 1, 0
      %v1074 = vsel %vm1042, 1, 0
      %v1075 = vsel %vm1043, 1, 0
      %v1076 = vsel %vm1044, 1, 0
      %v1077 = vsel %vm1045, 1, 0
      %v1078 = vsel %vm1046, 1, 0
      %v1079 = vsel %vm1047, 1, 0
      %v1080 = vsel %vm1048, 1, 0
      %v1081 = vsel %vm1049, 1, 0
      %v1082 = vsel %vm1050, 1, 0
      %v1083 = vsel %vm1051, 1, 0
      %v1084 = vsel %vm1052, 1, 0
      %v1085 = vcvt.s32.f32 %v1053
      %v1086 = vcvt.s32.f32 %v1054
      %v1087 = vcvt.s32.f32 %v1055
      %v1088 = vcvt.s32.f32 %v1056
      %v1089 = vcvt.s32.f32 %v1057
      %v1090 = vcvt.s32.f32 %v1058
      %v1091 = vcvt.s32.f32 %v1059
      %v1092 = vcvt.s32.f32 %v1060
      %v1093 = vcvt.s32.f32 %v1061
      %v1094 = vcvt.s32.f32 %v1062
      %v1095 = vcvt.s32.f32 %v1063
      %v1096 = vcvt.s32.f32 %v1064
      %v1097 = vcvt.s32.f32 %v1065
      %v1098 = vcvt.s32.f32 %v1066
      %v1099 = vcvt.s32.f32 %v1067
      %v1100 = vcvt.s32.f32 %v1068
      %v1101 = vcvt.s32.f32 %v1069
      %v1102 = vcvt.s32.f32 %v1070
      %v1103 = vcvt.s32.f32 %v1071
      %v1104 = vcvt.s32.f32 %v1072
      %v1105 = vcvt.s32.f32 %v1073
      %v1106 = vcvt.s32.f32 %v1074
      %v1107 = vcvt.s32.f32 %v1075
      %v1108 = vcvt.s32.f32 %v1076
      %v1109 = vcvt.s32.f32 %v1077
      %v1110 = vcvt.s32.f32 %v1078
      %v1111 = vcvt.s32.f32 %v1079
      %v1112 = vcvt.s32.f32 %v1080
      %v1113 = vcvt.s32.f32 %v1081
      %v1114 = vcvt.s32.f32 %v1082
      %v1115 = vcvt.s32.f32 %v1083
      %v1116 = vcvt.s32.f32 %v1084
      %v1117 = vmul.f32 %v796, %v1085
      %v1118 = vmul.f32 %v799, %v1086
      %v1119 = vmul.f32 %v804, %v1087
      %v1120 = vmul.f32 %v807, %v1088
      %v1121 = vmul.f32 %v812, %v1089
      %v1122 = vmul.f32 %v815, %v1090
      %v1123 = vmul.f32 %v820, %v1091
      %v1124 = vmul.f32 %v823, %v1092
      %v1125 = vmul.f32 %v828, %v1093
      %v1126 = vmul.f32 %v831, %v1094
      %v1127 = vmul.f32 %v836, %v1095
      %v1128 = vmul.f32 %v839, %v1096
      %v1129 = vmul.f32 %v844, %v1097
      %v1130 = vmul.f32 %v847, %v1098
      %v1131 = vmul.f32 %v852, %v1099
      %v1132 = vmul.f32 %v855, %v1100
      %v1133 = vmul.f32 %v860, %v1101
      %v1134 = vmul.f32 %v863, %v1102
      %v1135 = vmul.f32 %v868, %v1103
      %v1136 = vmul.f32 %v871, %v1104
      %v1137 = vmul.f32 %v876, %v1105
      %v1138 = vmul.f32 %v879, %v1106
      %v1139 = vmul.f32 %v884, %v1107
      %v1140 = vmul.f32 %v887, %v1108
      %v1141 = vmul.f32 %v892, %v1109
      %v1142 = vmul.f32 %v895, %v1110
      %v1143 = vmul.f32 %v900, %v1111
      %v1144 = vmul.f32 %v903, %v1112
      %v1145 = vmul.f32 %v908, %v1113
      %v1146 = vmul.f32 %v911, %v1114
      %v1147 = vmul.f32 %v916, %v1115
      %v1148 = vmul.f32 %v919, %v1116
      %v1149 = vld [vmem:[%s5] sm:$0x1]
      %v1150 = vadd.f32 %v1117, %v1118
      %v1151 = vadd.f32 %v1150, %v1119
      %v1152 = vadd.f32 %v1151, %v1120
      %v1153 = vadd.f32 %v1152, %v1121
      %v1154 = vadd.f32 %v1153, %v1122
      %v1155 = vadd.f32 %v1154, %v1123
      %v1156 = vadd.f32 %v1155, %v1124
      %v1157 = vadd.f32 %v1156, %v1125
      %v1158 = vadd.f32 %v1157, %v1126
      %v1159 = vadd.f32 %v1158, %v1127
      %v1160 = vadd.f32 %v1159, %v1128
      %v1161 = vadd.f32 %v1160, %v1129
      %v1162 = vadd.f32 %v1161, %v1130
      %v1163 = vadd.f32 %v1162, %v1131
      %v1164 = vadd.f32 %v1163, %v1132
      %v1165 = vadd.f32 %v1164, %v1133
      %v1166 = vadd.f32 %v1165, %v1134
      %v1167 = vadd.f32 %v1166, %v1135
      %v1168 = vadd.f32 %v1167, %v1136
      %v1169 = vadd.f32 %v1168, %v1137
      %v1170 = vadd.f32 %v1169, %v1138
      %v1171 = vadd.f32 %v1170, %v1139
      %v1172 = vadd.f32 %v1171, %v1140
      %v1173 = vadd.f32 %v1172, %v1141
      %v1174 = vadd.f32 %v1173, %v1142
      %v1175 = vadd.f32 %v1174, %v1143
      %v1176 = vadd.f32 %v1175, %v1144
      %v1177 = vadd.f32 %v1176, %v1145
      %v1178 = vadd.f32 %v1177, %v1146
      %v1179 = vadd.f32 %v1178, %v1147
      %v1180 = vadd.f32 %v1179, %v1148
      %v1181 = vrot.slane %v1180, 4
      %v1182 = vadd.f32 %v1180, %v1181
      %v1183 = vrot.slane %v1182, 2
      %v1184 = vadd.f32 %v1182, %v1183
      %v1185 = vrot.slane %v1184, 1
      %v1186 = vadd.f32 %v1184, %v1185
      %v1187 = vadd.f32 %v1149, %v1186
      %1188 = vst [vmem:[%s5] sm:$0x1] %v1187
      %v1189 = vld [vmem:[%s6] sm:$0x1]
      %v1190 = vmul.f32 %v1117, %v1117
      %v1191 = vmul.f32 %v1118, %v1118
      %v1192 = vmul.f32 %v1119, %v1119
      %v1193 = vmul.f32 %v1120, %v1120
      %v1194 = vmul.f32 %v1121, %v1121
      %v1195 = vmul.f32 %v1122, %v1122
      %v1196 = vmul.f32 %v1123, %v1123
      %v1197 = vmul.f32 %v1124, %v1124
      %v1198 = vmul.f32 %v1125, %v1125
      %v1199 = vmul.f32 %v1126, %v1126
      %v1200 = vmul.f32 %v1127, %v1127
      %v1201 = vmul.f32 %v1128, %v1128
      %v1202 = vmul.f32 %v1129, %v1129
      %v1203 = vmul.f32 %v1130, %v1130
      %v1204 = vmul.f32 %v1131, %v1131
      %v1205 = vmul.f32 %v1132, %v1132
      %v1206 = vmul.f32 %v1133, %v1133
      %v1207 = vmul.f32 %v1134, %v1134
      %v1208 = vmul.f32 %v1135, %v1135
      %v1209 = vmul.f32 %v1136, %v1136
      %v1210 = vmul.f32 %v1137, %v1137
      %v1211 = vmul.f32 %v1138, %v1138
      %v1212 = vmul.f32 %v1139, %v1139
      %v1213 = vmul.f32 %v1140, %v1140
      %v1214 = vmul.f32 %v1141, %v1141
      %v1215 = vmul.f32 %v1142, %v1142
      %v1216 = vmul.f32 %v1143, %v1143
      %v1217 = vmul.f32 %v1144, %v1144
      %v1218 = vmul.f32 %v1145, %v1145
      %v1219 = vmul.f32 %v1146, %v1146
      %v1220 = vmul.f32 %v1147, %v1147
      %v1221 = vmul.f32 %v1148, %v1148
      %v1222 = vadd.f32 %v1190, %v1191
      %v1223 = vadd.f32 %v1222, %v1192
      %v1224 = vadd.f32 %v1223, %v1193
      %v1225 = vadd.f32 %v1224, %v1194
      %v1226 = vadd.f32 %v1225, %v1195
      %v1227 = vadd.f32 %v1226, %v1196
      %v1228 = vadd.f32 %v1227, %v1197
      %v1229 = vadd.f32 %v1228, %v1198
      %v1230 = vadd.f32 %v1229, %v1199
      %v1231 = vadd.f32 %v1230, %v1200
      %v1232 = vadd.f32 %v1231, %v1201
      %v1233 = vadd.f32 %v1232, %v1202
      %v1234 = vadd.f32 %v1233, %v1203
      %v1235 = vadd.f32 %v1234, %v1204
      %v1236 = vadd.f32 %v1235, %v1205
      %v1237 = vadd.f32 %v1236, %v1206
      %v1238 = vadd.f32 %v1237, %v1207
      %v1239 = vadd.f32 %v1238, %v1208
      %v1240 = vadd.f32 %v1239, %v1209
      %v1241 = vadd.f32 %v1240, %v1210
      %v1242 = vadd.f32 %v1241, %v1211
      %v1243 = vadd.f32 %v1242, %v1212
      %v1244 = vadd.f32 %v1243, %v1213
      %v1245 = vadd.f32 %v1244, %v1214
      %v1246 = vadd.f32 %v1245, %v1215
      %v1247 = vadd.f32 %v1246, %v1216
      %v1248 = vadd.f32 %v1247, %v1217
      %v1249 = vadd.f32 %v1248, %v1218
      %v1250 = vadd.f32 %v1249, %v1219
      %v1251 = vadd.f32 %v1250, %v1220
      %v1252 = vadd.f32 %v1251, %v1221
      %v1253 = vrot.slane %v1252, 4
      %v1254 = vadd.f32 %v1252, %v1253
      %v1255 = vrot.slane %v1254, 2
      %v1256 = vadd.f32 %v1254, %v1255
      %v1257 = vrot.slane %v1256, 1
      %v1258 = vadd.f32 %v1256, %v1257
      %v1259 = vadd.f32 %v1189, %v1258
      %1260 = vst [vmem:[%s6] sm:$0x1] %v1259
      %s1261 = smul.u32 32, %s18
      %p1262 = scmp.lt.s32.totalorder %s1261, 63
      %s1263 = scalar_select %p1262, %s1261, 63
      %s1264 = smul.addr %s1263, 8
      %s1265 = scalar_lea.vmem %s4, %s1264
      // Predicated region
      $region41: #{pixel_discriminator_forward.2} parent=35 // pred_check
        %p1266 = pneg %p125
      $region42: #{pixel_discriminator_forward.2} parent=35 // pred_check_branch
        %1268 = sbr.rel (%p1266) target = $region44
      $region43: #{pixel_discriminator_forward.2} parent=35 // pred_region
        %s1269 = smul.u32 32, %s18
      $region44: #{pixel_discriminator_forward.2} parent=35 // pred_fallthru
        _
      // Predicated region
      $region45: #{pixel_discriminator_forward.2} parent=35 // pred_check
        %p1270 = pneg %p146
      $region46: #{pixel_discriminator_forward.2} parent=35 // pred_check_branch
        %1272 = sbr.rel (%p1270) target = $region48
      $region47: #{pixel_discriminator_forward.2} parent=35 // pred_region
        _
      $region48: #{pixel_discriminator_forward.2} parent=35 // pred_fallthru
        _
      // Predicated region
      $region49: #{pixel_discriminator_forward.2} parent=35 // pred_check
        %p1273 = pneg %p167
      $region50: #{pixel_discriminator_forward.2} parent=35 // pred_check_branch
        %1275 = sbr.rel (%p1273) target = $region52
      $region51: #{pixel_discriminator_forward.2} parent=35 // pred_region
        _
      $region52: #{pixel_discriminator_forward.2} parent=35 // pred_fallthru
        _
      // Predicated region
      $region53: #{pixel_discriminator_forward.2} parent=35 // pred_check
        %p1276 = pneg %p146
      $region54: #{pixel_discriminator_forward.2} parent=35 // pred_check_branch
        %1278 = sbr.rel (%p1276) target = $region56
      $region55: #{pixel_discriminator_forward.2} parent=35 // pred_region
        _
      $region56: #{pixel_discriminator_forward.2} parent=35 // pred_fallthru
        _
      // Predicated region
      $region57: #{pixel_discriminator_forward.2} parent=35 // pred_check
        %p1279 = pneg %p167
      $region58: #{pixel_discriminator_forward.2} parent=35 // pred_check_branch
        %1281 = sbr.rel (%p1279) target = $region60
      $region59: #{pixel_discriminator_forward.2} parent=35 // pred_region
        _
      $region60: #{pixel_discriminator_forward.2} parent=35 // pred_fallthru
        _
    $region36: #{pixel_discriminator_forward.2} parent=5 // pred_fallthru
      _
    %p1282 = scmp.le.s32.totalorder 2, %s13
    // Predicated region
    $region61: #{pixel_discriminator_forward.2} parent=5 // pred_check
      %p1283 = pneg %p1282
    $region62: #{pixel_discriminator_forward.2} parent=5 // pred_check_branch
      %1285 = sbr.rel (%p1283) target = $region64
    $region63: #{pixel_discriminator_forward.2} parent=5 // pred_region
      %s1286 = ssub.s32 %s13, 2
      // Predicated region
      $region65: #{pixel_discriminator_forward.2} parent=63 // pred_check
        %p1287 = pneg %p131
      $region66: #{pixel_discriminator_forward.2} parent=63 // pred_check_branch
        %1289 = sbr.rel (%p1287) target = $region68
      $region67: #{pixel_discriminator_forward.2} parent=63 // pred_region
        %s1290 = smul.u32 32, %s19
        %p1291 = scmp.lt.s32.totalorder %s1290, 63
        %s1292 = scalar_select %p1291, %s1290, 63
        %s1293 = smul.addr %s1292, 8
        %s1294 = scalar_lea.vmem %s4, %s1293
      $region68: #{pixel_discriminator_forward.2} parent=63 // pred_fallthru
        _
    $region64: #{pixel_discriminator_forward.2} parent=5 // pred_fallthru
      _
  $region6: #{pixel_discriminator_forward.2} parent=0 // loop_footer
    %s17 = sadd.s32 1, %s13
  $region7: #{pixel_discriminator_forward.2} parent=0 // loop_footer_branch
    %12 = sbr.rel target = $region3
  $region8: #{pixel_discriminator_forward.2} parent=0 // loop_exit
    _

</llo_original>
